<compile_context>
chip_gen: v6e
topology: v6e:2x2x1
jax: 0.10.0
libtpu: 0.0.40
codegen_flags: <defaults>
</compile_context>

<pallas_src>
import math

import jax
import jax.numpy as jnp
from jax import lax
from jax.experimental import pallas as pl
from jax.experimental.pallas import tpu as pltpu


# ----------------------------- Pallas kernel -------------------------------

def _bigru_kernel(x_ref, h0_ref,
                  wih_f_ref, wih_b_ref, bi_f_ref, bi_b_ref,
                  whh_f_ref, whh_b_ref, bhn_f_ref, bhn_b_ref,
                  out_ref, hn_ref):
    """Fused bidirectional GRU recurrence, everything resident in VMEM.

    x_ref:    (T*B, E)  time-major flattened inputs
    h0_ref:   (2, B, H) initial hidden states (fwd, bwd)
    wih_*:    (E, 3H)   input weights per direction, PyTorch gate order [r,z,n]
    bi_*:     (1, 3H)   b_ih + [b_hr, b_hz, 0] (r/z hidden biases pre-folded)
    whh_*:    (H, 3H)   hidden weights per direction
    bhn_*:    (1, H)    hidden bias of the n gate (cannot be folded: under r*)
    out_ref:  (T*B, 2H) out[t*B:(t+1)*B, :H] = fwd, [..., H:] = bwd
    hn_ref:   (2, B, H) final hidden states
    """
    B, H = h0_ref.shape[1], h0_ref.shape[2]
    TB = x_ref.shape[0]
    T = TB // B

    # ---- hoisted input projections: two MXU matmuls, biases folded in ----
    gi_f = jnp.dot(x_ref[...], wih_f_ref[...],
                   preferred_element_type=jnp.float32) + bi_f_ref[...]
    gi_b = jnp.dot(x_ref[...], wih_b_ref[...],
                   preferred_element_type=jnp.float32) + bi_b_ref[...]

    # ---- loop-invariant operands hoisted once, off the serial path ----
    whh_f = whh_f_ref[...]
    whh_b = whh_b_ref[...]
    bhn_f = jnp.broadcast_to(bhn_f_ref[...], (B, H))
    bhn_b = jnp.broadcast_to(bhn_b_ref[...], (B, H))

    def step(gi, gh, bhn, h_prev):
        # PyTorch GRU gate order [r, z, n]; r/z hidden biases already in gi.
        r = jax.nn.sigmoid(gi[:, 0:H] + gh[:, 0:H])
        z = jax.nn.sigmoid(gi[:, H:2 * H] + gh[:, H:2 * H])
        n = jnp.tanh(gi[:, 2 * H:3 * H] + r * (gh[:, 2 * H:3 * H] + bhn))
        # (1-z)*n + z*h  ==  n + z*(h - n)   (one multiply fewer)
        return n + z * (h_prev - n)

    h_f = h0_ref[0]
    h_b = h0_ref[1]

    # Fused fwd/bwd recurrence, fully unrolled (T is small and static):
    # step i advances fwd at t=i and bwd at t=T-1-i.  Only h @ W_hh remains
    # on the serial dependency chain; the two chains are independent.
    for i in range(T):
        tf = i
        tb = T - 1 - i
        gh_f = jnp.dot(h_f, whh_f, preferred_element_type=jnp.float32)
        gh_b = jnp.dot(h_b, whh_b, preferred_element_type=jnp.float32)
        h_f = step(gi_f[tf * B:(tf + 1) * B, :], gh_f, bhn_f, h_f)
        h_b = step(gi_b[tb * B:(tb + 1) * B, :], gh_b, bhn_b, h_b)
        out_ref[tf * B:(tf + 1) * B, 0:H] = h_f          # fwd half
        out_ref[tb * B:(tb + 1) * B, H:2 * H] = h_b      # bwd half (time-aligned)

    hn_ref[0] = h_f
    hn_ref[1] = h_b


def bigru_pallas(seq, h0, params):
    """seq: (T, B, E) f32, h0: (2, B, H) f32 -> (out (T,B,2H), h_n (2,B,H))."""
    T, B, E = seq.shape
    H = params["whh_f_t"].shape[0]

    def fold_bias(bih, bhh):
        # Fold b_hr, b_hz into the hoisted projection bias; b_hn stays inside
        # the recurrence (it is multiplied by r there).
        return jnp.concatenate([bih[:, :2 * H] + bhh[:, :2 * H],
                                bih[:, 2 * H:]], axis=1)

    bi_f = fold_bias(params["bih_f"], params["bhh_f"])       # (1, 3H)
    bi_b = fold_bias(params["bih_b"], params["bhh_b"])       # (1, 3H)
    bhn_f = params["bhh_f"][:, 2 * H:]                       # (1, H)
    bhn_b = params["bhh_b"][:, 2 * H:]                       # (1, H)

    vmem = pl.BlockSpec(memory_space=pltpu.MemorySpace.VMEM)
    out2d, hn = pl.pallas_call(
        _bigru_kernel,
        out_shape=(
            jax.ShapeDtypeStruct((T * B, 2 * H), jnp.float32),
            jax.ShapeDtypeStruct((2, B, H), jnp.float32),
        ),
        in_specs=[vmem] * 10,
        out_specs=(vmem, vmem),
    )(
        seq.reshape(T * B, E), h0,
        params["wih_f_t"], params["wih_b_t"], bi_f, bi_b,
        params["whh_f_t"], params["whh_b_t"], bhn_f, bhn_b,
    )
    return out2d.reshape(T, B, 2 * H), hn


# --------------------------- WordModel forward ------------------------------

def word_model_forward(x, hidden, params, *, batch_size, embed_dim):
    """Mirror of WordModel.forward.

    x: int32 (d0, d1, d2); hidden: (2, d0*d1, H).
    Returns (output (d2, d0*d1, 2H), h_n (2, d0*d1, H)).
    """
    true_x_size = x.shape
    x_flat = x.reshape(batch_size, -1)                      # x.view(batch_size, -1)
    emb = params["embed"][x_flat]                           # nn.Embedding lookup (glue)
    emb = emb.reshape(true_x_size[0] * true_x_size[1], true_x_size[2], embed_dim)
    seq = jnp.transpose(emb, (1, 0, 2))                     # (T, B, E), time-major
    return bigru_pallas(seq, hidden, params)


# --------------------------- pure-JAX reference -----------------------------

def _gru_dir_ref(seq, h0, wih_t, whh_t, bih, bhh, reverse):
    H = whh_t.shape[0]

    def cell(h, x_t):
        gi = x_t @ wih_t + bih
        gh = h @ whh_t + bhh
        r = jax.nn.sigmoid(gi[:, 0:H] + gh[:, 0:H])
        z = jax.nn.sigmoid(gi[:, H:2 * H] + gh[:, H:2 * H])
        n = jnp.tanh(gi[:, 2 * H:] + r * gh[:, 2 * H:])
        h_new = (1.0 - z) * n + z * h
        return h_new, h_new

    xs = seq[::-1] if reverse else seq
    h_last, outs = lax.scan(cell, h0, xs)
    outs = outs[::-1] if reverse else outs
    return outs, h_last


def word_model_forward_ref(x, hidden, params, *, batch_size, embed_dim):
    true_x_size = x.shape
    emb = params["embed"][x.reshape(batch_size, -1)]
    emb = emb.reshape(true_x_size[0] * true_x_size[1], true_x_size[2], embed_dim)
    seq = jnp.transpose(emb, (1, 0, 2))
    of, hf = _gru_dir_ref(seq, hidden[0], params["wih_f_t"], params["whh_f_t"],
                          params["bih_f"][0], params["bhh_f"][0], reverse=False)
    ob, hb = _gru_dir_ref(seq, hidden[1], params["wih_b_t"], params["whh_b_t"],
                          params["bih_b"][0], params["bhh_b"][0], reverse=True)
    return jnp.concatenate([of, ob], axis=-1), jnp.stack([hf, hb])


# ------------------------------ param init ----------------------------------

def init_params(key, vocab_size, embed_dim, hidden_dim):
    keys = jax.random.split(key, 9)
    k = 1.0 / math.sqrt(hidden_dim)

    def u(kk, shape, lim):
        return jax.random.uniform(kk, shape, jnp.float32, -lim, lim)

    # nn.Embedding with uniform_(-0.1, 0.1)  (init_embedding)
    embed = u(keys[0], (vocab_size, embed_dim), 0.1)
    # torch.nn.GRU default init: U(-1/sqrt(H), 1/sqrt(H)); gate order [r,z,n].
    params = {
        "embed": embed,
        "wih_f_t": u(keys[1], (embed_dim, 3 * hidden_dim), k),
        "whh_f_t": u(keys[2], (hidden_dim, 3 * hidden_dim), k),
        "bih_f":   u(keys[3], (1, 3 * hidden_dim), k),
        "bhh_f":   u(keys[4], (1, 3 * hidden_dim), k),
        "wih_b_t": u(keys[5], (embed_dim, 3 * hidden_dim), k),
        "whh_b_t": u(keys[6], (hidden_dim, 3 * hidden_dim), k),
        "bih_b":   u(keys[7], (1, 3 * hidden_dim), k),
        "bhh_b":   u(keys[8], (1, 3 * hidden_dim), k),
    }
    return params


# --------------------------------- main --------------------------------------

if __name__ == "__main__":
    vocab_size = 50
    embed_dim = 16
    hidden_dim = 32
    d0, d1, d2 = 2, 2, 8          # x shape; GRU batch = d0*d1 = 4, seq len = d2 = 8
    batch_size = d0 * d1          # value passed to WordModel(...) constructor

    key = jax.random.PRNGKey(0)
    k_x, k_p = jax.random.split(key)

    x = jax.random.randint(k_x, (d0, d1, d2), 0, vocab_size, dtype=jnp.int32)
    hidden = jnp.zeros((2, d0 * d1, hidden_dim), jnp.float32)   # init_hidden
    params = init_params(k_p, vocab_size, embed_dim, hidden_dim)

    out, h_n = word_model_forward(x, hidden, params,
                                  batch_size=batch_size, embed_dim=embed_dim)
    out = jax.block_until_ready(out)
    h_n = jax.block_until_ready(h_n)

    # sanity-check against a pure-JAX reference GRU
    out_ref, h_n_ref = word_model_forward_ref(x, hidden, params,
                                              batch_size=batch_size,
                                              embed_dim=embed_dim)
    assert out.shape == (d2, d0 * d1, 2 * hidden_dim)
    assert h_n.shape == (2, d0 * d1, hidden_dim)
    assert jnp.max(jnp.abs(out - out_ref)) < 1e-3
    assert jnp.max(jnp.abs(h_n - h_n_ref)) < 1e-3

    print("KERNEL_OK")
</pallas_src>

<mosaic_0001>
module attributes {stable_mosaic.version = 11 : i64} {
  func.func @_bigru_kernel(%arg0: memref<32x16xf32, #tpu.memory_space<vmem>>, %arg1: memref<2x4x32xf32, #tpu.memory_space<vmem>>, %arg2: memref<16x96xf32, #tpu.memory_space<vmem>>, %arg3: memref<16x96xf32, #tpu.memory_space<vmem>>, %arg4: memref<1x96xf32, #tpu.memory_space<vmem>>, %arg5: memref<1x96xf32, #tpu.memory_space<vmem>>, %arg6: memref<32x96xf32, #tpu.memory_space<vmem>>, %arg7: memref<32x96xf32, #tpu.memory_space<vmem>>, %arg8: memref<1x32xf32, #tpu.memory_space<vmem>>, %arg9: memref<1x32xf32, #tpu.memory_space<vmem>>, %arg10: memref<32x64xf32, #tpu.memory_space<vmem>>, %arg11: memref<2x4x32xf32, #tpu.memory_space<vmem>>) attributes {dimension_semantics = [], scalar_prefetch = 0 : i64, scratch_operands = 0 : i64, tpu.core_type = #tpu.core_type<tc>} {
    %c0 = arith.constant 0 : index
    %c0_0 = arith.constant 0 : index
    %0 = vector.load %arg0[%c0, %c0_0] : memref<32x16xf32, #tpu.memory_space<vmem>>, vector<32x16xf32>
    %c0_1 = arith.constant 0 : index
    %c0_2 = arith.constant 0 : index
    %1 = vector.load %arg2[%c0_1, %c0_2] : memref<16x96xf32, #tpu.memory_space<vmem>>, vector<16x96xf32>
    %cst = arith.constant dense<0.000000e+00> : vector<32x96xf32>
    %2 = tpu.matmul %0, %1, %cst {dimension_numbers = #tpu.dot_dimension_numbers<[1], [0], [0], [1], [0, 0, 1, 1], [], []>} : vector<32x16xf32>, vector<16x96xf32>, vector<32x96xf32> -> vector<32x96xf32>
    %c0_3 = arith.constant 0 : index
    %c0_4 = arith.constant 0 : index
    %3 = vector.load %arg4[%c0_3, %c0_4] : memref<1x96xf32, #tpu.memory_space<vmem>>, vector<1x96xf32>
    %4 = vector.broadcast %3 : vector<1x96xf32> to vector<32x96xf32>
    %5 = arith.addf %2, %4 : vector<32x96xf32>
    %c0_5 = arith.constant 0 : index
    %c0_6 = arith.constant 0 : index
    %6 = vector.load %arg0[%c0_5, %c0_6] : memref<32x16xf32, #tpu.memory_space<vmem>>, vector<32x16xf32>
    %c0_7 = arith.constant 0 : index
    %c0_8 = arith.constant 0 : index
    %7 = vector.load %arg3[%c0_7, %c0_8] : memref<16x96xf32, #tpu.memory_space<vmem>>, vector<16x96xf32>
    %cst_9 = arith.constant dense<0.000000e+00> : vector<32x96xf32>
    %8 = tpu.matmul %6, %7, %cst_9 {dimension_numbers = #tpu.dot_dimension_numbers<[1], [0], [0], [1], [0, 0, 1, 1], [], []>} : vector<32x16xf32>, vector<16x96xf32>, vector<32x96xf32> -> vector<32x96xf32>
    %c0_10 = arith.constant 0 : index
    %c0_11 = arith.constant 0 : index
    %9 = vector.load %arg5[%c0_10, %c0_11] : memref<1x96xf32, #tpu.memory_space<vmem>>, vector<1x96xf32>
    %10 = vector.broadcast %9 : vector<1x96xf32> to vector<32x96xf32>
    %11 = arith.addf %8, %10 : vector<32x96xf32>
    %c0_12 = arith.constant 0 : index
    %c0_13 = arith.constant 0 : index
    %12 = vector.load %arg6[%c0_12, %c0_13] : memref<32x96xf32, #tpu.memory_space<vmem>>, vector<32x96xf32>
    %c0_14 = arith.constant 0 : index
    %c0_15 = arith.constant 0 : index
    %13 = vector.load %arg7[%c0_14, %c0_15] : memref<32x96xf32, #tpu.memory_space<vmem>>, vector<32x96xf32>
    %c0_16 = arith.constant 0 : index
    %c0_17 = arith.constant 0 : index
    %14 = vector.load %arg8[%c0_16, %c0_17] : memref<1x32xf32, #tpu.memory_space<vmem>>, vector<1x32xf32>
    %15 = vector.shape_cast %14 : vector<1x32xf32> to vector<1x32xf32>
    %16 = vector.broadcast %15 : vector<1x32xf32> to vector<4x32xf32>
    %c0_18 = arith.constant 0 : index
    %c0_19 = arith.constant 0 : index
    %17 = vector.load %arg9[%c0_18, %c0_19] : memref<1x32xf32, #tpu.memory_space<vmem>>, vector<1x32xf32>
    %18 = vector.shape_cast %17 : vector<1x32xf32> to vector<1x32xf32>
    %19 = vector.broadcast %18 : vector<1x32xf32> to vector<4x32xf32>
    %c0_20 = arith.constant 0 : index
    %c0_21 = arith.constant 0 : index
    %c0_22 = arith.constant 0 : index
    %20 = vector.load %arg1[%c0_20, %c0_21, %c0_22] : memref<2x4x32xf32, #tpu.memory_space<vmem>>, vector<1x4x32xf32>
    %21 = vector.shape_cast %20 : vector<1x4x32xf32> to vector<4x32xf32>
    %c1 = arith.constant 1 : index
    %c0_23 = arith.constant 0 : index
    %c0_24 = arith.constant 0 : index
    %22 = vector.load %arg1[%c1, %c0_23, %c0_24] : memref<2x4x32xf32, #tpu.memory_space<vmem>>, vector<1x4x32xf32>
    %23 = vector.shape_cast %22 : vector<1x4x32xf32> to vector<4x32xf32>
    %cst_25 = arith.constant dense<0.000000e+00> : vector<4x96xf32>
    %24 = tpu.matmul %21, %12, %cst_25 {dimension_numbers = #tpu.dot_dimension_numbers<[1], [0], [0], [1], [0, 0, 1, 1], [], []>} : vector<4x32xf32>, vector<32x96xf32>, vector<4x96xf32> -> vector<4x96xf32>
    %cst_26 = arith.constant dense<0.000000e+00> : vector<4x96xf32>
    %25 = tpu.matmul %23, %13, %cst_26 {dimension_numbers = #tpu.dot_dimension_numbers<[1], [0], [0], [1], [0, 0, 1, 1], [], []>} : vector<4x32xf32>, vector<32x96xf32>, vector<4x96xf32> -> vector<4x96xf32>
    %26 = vector.extract_strided_slice %5 {offsets = [0, 0], sizes = [4, 96], strides = [1, 1]} : vector<32x96xf32> to vector<4x96xf32>
    %27 = vector.extract_strided_slice %26 {offsets = [0, 0], sizes = [4, 32], strides = [1, 1]} : vector<4x96xf32> to vector<4x32xf32>
    %28 = vector.extract_strided_slice %24 {offsets = [0, 0], sizes = [4, 32], strides = [1, 1]} : vector<4x96xf32> to vector<4x32xf32>
    %29 = arith.addf %27, %28 : vector<4x32xf32>
    %30 = arith.negf %29 : vector<4x32xf32>
    %31 = math.exp %30 : vector<4x32xf32>
    %cst_27 = arith.constant 1.000000e+00 : f32
    %32 = vector.broadcast %cst_27 : f32 to vector<4x32xf32>
    %33 = arith.addf %32, %31 : vector<4x32xf32>
    %34 = arith.divf %32, %33 : vector<4x32xf32>
    %35 = vector.extract_strided_slice %26 {offsets = [0, 32], sizes = [4, 32], strides = [1, 1]} : vector<4x96xf32> to vector<4x32xf32>
    %36 = vector.extract_strided_slice %24 {offsets = [0, 32], sizes = [4, 32], strides = [1, 1]} : vector<4x96xf32> to vector<4x32xf32>
    %37 = arith.addf %35, %36 : vector<4x32xf32>
    %38 = arith.negf %37 : vector<4x32xf32>
    %39 = math.exp %38 : vector<4x32xf32>
    %cst_28 = arith.constant 1.000000e+00 : f32
    %40 = vector.broadcast %cst_28 : f32 to vector<4x32xf32>
    %41 = arith.addf %40, %39 : vector<4x32xf32>
    %42 = arith.divf %40, %41 : vector<4x32xf32>
    %43 = vector.extract_strided_slice %26 {offsets = [0, 64], sizes = [4, 32], strides = [1, 1]} : vector<4x96xf32> to vector<4x32xf32>
    %44 = vector.extract_strided_slice %24 {offsets = [0, 64], sizes = [4, 32], strides = [1, 1]} : vector<4x96xf32> to vector<4x32xf32>
    %45 = arith.addf %44, %16 : vector<4x32xf32>
    %46 = arith.mulf %34, %45 : vector<4x32xf32>
    %47 = arith.addf %43, %46 : vector<4x32xf32>
    %48 = math.tanh %47 : vector<4x32xf32>
    %49 = arith.subf %21, %48 : vector<4x32xf32>
    %50 = arith.mulf %42, %49 : vector<4x32xf32>
    %51 = arith.addf %48, %50 : vector<4x32xf32>
    %52 = vector.extract_strided_slice %11 {offsets = [28, 0], sizes = [4, 96], strides = [1, 1]} : vector<32x96xf32> to vector<4x96xf32>
    %53 = vector.extract_strided_slice %52 {offsets = [0, 0], sizes = [4, 32], strides = [1, 1]} : vector<4x96xf32> to vector<4x32xf32>
    %54 = vector.extract_strided_slice %25 {offsets = [0, 0], sizes = [4, 32], strides = [1, 1]} : vector<4x96xf32> to vector<4x32xf32>
    %55 = arith.addf %53, %54 : vector<4x32xf32>
    %56 = arith.negf %55 : vector<4x32xf32>
    %57 = math.exp %56 : vector<4x32xf32>
    %cst_29 = arith.constant 1.000000e+00 : f32
    %58 = vector.broadcast %cst_29 : f32 to vector<4x32xf32>
    %59 = arith.addf %58, %57 : vector<4x32xf32>
    %60 = arith.divf %58, %59 : vector<4x32xf32>
    %61 = vector.extract_strided_slice %52 {offsets = [0, 32], sizes = [4, 32], strides = [1, 1]} : vector<4x96xf32> to vector<4x32xf32>
    %62 = vector.extract_strided_slice %25 {offsets = [0, 32], sizes = [4, 32], strides = [1, 1]} : vector<4x96xf32> to vector<4x32xf32>
    %63 = arith.addf %61, %62 : vector<4x32xf32>
    %64 = arith.negf %63 : vector<4x32xf32>
    %65 = math.exp %64 : vector<4x32xf32>
    %cst_30 = arith.constant 1.000000e+00 : f32
    %66 = vector.broadcast %cst_30 : f32 to vector<4x32xf32>
    %67 = arith.addf %66, %65 : vector<4x32xf32>
    %68 = arith.divf %66, %67 : vector<4x32xf32>
    %69 = vector.extract_strided_slice %52 {offsets = [0, 64], sizes = [4, 32], strides = [1, 1]} : vector<4x96xf32> to vector<4x32xf32>
    %70 = vector.extract_strided_slice %25 {offsets = [0, 64], sizes = [4, 32], strides = [1, 1]} : vector<4x96xf32> to vector<4x32xf32>
    %71 = arith.addf %70, %19 : vector<4x32xf32>
    %72 = arith.mulf %60, %71 : vector<4x32xf32>
    %73 = arith.addf %69, %72 : vector<4x32xf32>
    %74 = math.tanh %73 : vector<4x32xf32>
    %75 = arith.subf %23, %74 : vector<4x32xf32>
    %76 = arith.mulf %68, %75 : vector<4x32xf32>
    %77 = arith.addf %74, %76 : vector<4x32xf32>
    %c0_31 = arith.constant 0 : index
    %c0_32 = arith.constant 0 : index
    %78 = vector.load %arg10[%c0_31, %c0_32] : memref<32x64xf32, #tpu.memory_space<vmem>>, vector<4x32xf32>
    tpu.vector_store %arg10[%c0_31, %c0_32], %51 {strides = array<i32>} : memref<32x64xf32, #tpu.memory_space<vmem>>, vector<4x32xf32>,
    %c28 = arith.constant 28 : index
    %c32 = arith.constant 32 : index
    %79 = vector.load %arg10[%c28, %c32] : memref<32x64xf32, #tpu.memory_space<vmem>>, vector<4x32xf32>
    tpu.vector_store %arg10[%c28, %c32], %77 {strides = array<i32>} : memref<32x64xf32, #tpu.memory_space<vmem>>, vector<4x32xf32>,
    %cst_33 = arith.constant dense<0.000000e+00> : vector<4x96xf32>
    %80 = tpu.matmul %51, %12, %cst_33 {dimension_numbers = #tpu.dot_dimension_numbers<[1], [0], [0], [1], [0, 0, 1, 1], [], []>} : vector<4x32xf32>, vector<32x96xf32>, vector<4x96xf32> -> vector<4x96xf32>
    %cst_34 = arith.constant dense<0.000000e+00> : vector<4x96xf32>
    %81 = tpu.matmul %77, %13, %cst_34 {dimension_numbers = #tpu.dot_dimension_numbers<[1], [0], [0], [1], [0, 0, 1, 1], [], []>} : vector<4x32xf32>, vector<32x96xf32>, vector<4x96xf32> -> vector<4x96xf32>
    %82 = vector.extract_strided_slice %5 {offsets = [4, 0], sizes = [4, 96], strides = [1, 1]} : vector<32x96xf32> to vector<4x96xf32>
    %83 = vector.extract_strided_slice %82 {offsets = [0, 0], sizes = [4, 32], strides = [1, 1]} : vector<4x96xf32> to vector<4x32xf32>
    %84 = vector.extract_strided_slice %80 {offsets = [0, 0], sizes = [4, 32], strides = [1, 1]} : vector<4x96xf32> to vector<4x32xf32>
    %85 = arith.addf %83, %84 : vector<4x32xf32>
    %86 = arith.negf %85 : vector<4x32xf32>
    %87 = math.exp %86 : vector<4x32xf32>
    %cst_35 = arith.constant 1.000000e+00 : f32
    %88 = vector.broadcast %cst_35 : f32 to vector<4x32xf32>
    %89 = arith.addf %88, %87 : vector<4x32xf32>
    %90 = arith.divf %88, %89 : vector<4x32xf32>
    %91 = vector.extract_strided_slice %82 {offsets = [0, 32], sizes = [4, 32], strides = [1, 1]} : vector<4x96xf32> to vector<4x32xf32>
    %92 = vector.extract_strided_slice %80 {offsets = [0, 32], sizes = [4, 32], strides = [1, 1]} : vector<4x96xf32> to vector<4x32xf32>
    %93 = arith.addf %91, %92 : vector<4x32xf32>
    %94 = arith.negf %93 : vector<4x32xf32>
    %95 = math.exp %94 : vector<4x32xf32>
    %cst_36 = arith.constant 1.000000e+00 : f32
    %96 = vector.broadcast %cst_36 : f32 to vector<4x32xf32>
    %97 = arith.addf %96, %95 : vector<4x32xf32>
    %98 = arith.divf %96, %97 : vector<4x32xf32>
    %99 = vector.extract_strided_slice %82 {offsets = [0, 64], sizes = [4, 32], strides = [1, 1]} : vector<4x96xf32> to vector<4x32xf32>
    %100 = vector.extract_strided_slice %80 {offsets = [0, 64], sizes = [4, 32], strides = [1, 1]} : vector<4x96xf32> to vector<4x32xf32>
    %101 = arith.addf %100, %16 : vector<4x32xf32>
    %102 = arith.mulf %90, %101 : vector<4x32xf32>
    %103 = arith.addf %99, %102 : vector<4x32xf32>
    %104 = math.tanh %103 : vector<4x32xf32>
    %105 = arith.subf %51, %104 : vector<4x32xf32>
    %106 = arith.mulf %98, %105 : vector<4x32xf32>
    %107 = arith.addf %104, %106 : vector<4x32xf32>
    %108 = vector.extract_strided_slice %11 {offsets = [24, 0], sizes = [4, 96], strides = [1, 1]} : vector<32x96xf32> to vector<4x96xf32>
    %109 = vector.extract_strided_slice %108 {offsets = [0, 0], sizes = [4, 32], strides = [1, 1]} : vector<4x96xf32> to vector<4x32xf32>
    %110 = vector.extract_strided_slice %81 {offsets = [0, 0], sizes = [4, 32], strides = [1, 1]} : vector<4x96xf32> to vector<4x32xf32>
    %111 = arith.addf %109, %110 : vector<4x32xf32>
    %112 = arith.negf %111 : vector<4x32xf32>
    %113 = math.exp %112 : vector<4x32xf32>
    %cst_37 = arith.constant 1.000000e+00 : f32
    %114 = vector.broadcast %cst_37 : f32 to vector<4x32xf32>
    %115 = arith.addf %114, %113 : vector<4x32xf32>
    %116 = arith.divf %114, %115 : vector<4x32xf32>
    %117 = vector.extract_strided_slice %108 {offsets = [0, 32], sizes = [4, 32], strides = [1, 1]} : vector<4x96xf32> to vector<4x32xf32>
    %118 = vector.extract_strided_slice %81 {offsets = [0, 32], sizes = [4, 32], strides = [1, 1]} : vector<4x96xf32> to vector<4x32xf32>
    %119 = arith.addf %117, %118 : vector<4x32xf32>
    %120 = arith.negf %119 : vector<4x32xf32>
    %121 = math.exp %120 : vector<4x32xf32>
    %cst_38 = arith.constant 1.000000e+00 : f32
    %122 = vector.broadcast %cst_38 : f32 to vector<4x32xf32>
    %123 = arith.addf %122, %121 : vector<4x32xf32>
    %124 = arith.divf %122, %123 : vector<4x32xf32>
    %125 = vector.extract_strided_slice %108 {offsets = [0, 64], sizes = [4, 32], strides = [1, 1]} : vector<4x96xf32> to vector<4x32xf32>
    %126 = vector.extract_strided_slice %81 {offsets = [0, 64], sizes = [4, 32], strides = [1, 1]} : vector<4x96xf32> to vector<4x32xf32>
    %127 = arith.addf %126, %19 : vector<4x32xf32>
    %128 = arith.mulf %116, %127 : vector<4x32xf32>
    %129 = arith.addf %125, %128 : vector<4x32xf32>
    %130 = math.tanh %129 : vector<4x32xf32>
    %131 = arith.subf %77, %130 : vector<4x32xf32>
    %132 = arith.mulf %124, %131 : vector<4x32xf32>
    %133 = arith.addf %130, %132 : vector<4x32xf32>
    %c4 = arith.constant 4 : index
    %c0_39 = arith.constant 0 : index
    %134 = vector.load %arg10[%c4, %c0_39] : memref<32x64xf32, #tpu.memory_space<vmem>>, vector<4x32xf32>
    tpu.vector_store %arg10[%c4, %c0_39], %107 {strides = array<i32>} : memref<32x64xf32, #tpu.memory_space<vmem>>, vector<4x32xf32>,
    %c24 = arith.constant 24 : index
    %c32_40 = arith.constant 32 : index
    %135 = vector.load %arg10[%c24, %c32_40] : memref<32x64xf32, #tpu.memory_space<vmem>>, vector<4x32xf32>
    tpu.vector_store %arg10[%c24, %c32_40], %133 {strides = array<i32>} : memref<32x64xf32, #tpu.memory_space<vmem>>, vector<4x32xf32>,
    %cst_41 = arith.constant dense<0.000000e+00> : vector<4x96xf32>
    %136 = tpu.matmul %107, %12, %cst_41 {dimension_numbers = #tpu.dot_dimension_numbers<[1], [0], [0], [1], [0, 0, 1, 1], [], []>} : vector<4x32xf32>, vector<32x96xf32>, vector<4x96xf32> -> vector<4x96xf32>
    %cst_42 = arith.constant dense<0.000000e+00> : vector<4x96xf32>
    %137 = tpu.matmul %133, %13, %cst_42 {dimension_numbers = #tpu.dot_dimension_numbers<[1], [0], [0], [1], [0, 0, 1, 1], [], []>} : vector<4x32xf32>, vector<32x96xf32>, vector<4x96xf32> -> vector<4x96xf32>
    %138 = vector.extract_strided_slice %5 {offsets = [8, 0], sizes = [4, 96], strides = [1, 1]} : vector<32x96xf32> to vector<4x96xf32>
    %139 = vector.extract_strided_slice %138 {offsets = [0, 0], sizes = [4, 32], strides = [1, 1]} : vector<4x96xf32> to vector<4x32xf32>
    %140 = vector.extract_strided_slice %136 {offsets = [0, 0], sizes = [4, 32], strides = [1, 1]} : vector<4x96xf32> to vector<4x32xf32>
    %141 = arith.addf %139, %140 : vector<4x32xf32>
    %142 = arith.negf %141 : vector<4x32xf32>
    %143 = math.exp %142 : vector<4x32xf32>
    %cst_43 = arith.constant 1.000000e+00 : f32
    %144 = vector.broadcast %cst_43 : f32 to vector<4x32xf32>
    %145 = arith.addf %144, %143 : vector<4x32xf32>
    %146 = arith.divf %144, %145 : vector<4x32xf32>
    %147 = vector.extract_strided_slice %138 {offsets = [0, 32], sizes = [4, 32], strides = [1, 1]} : vector<4x96xf32> to vector<4x32xf32>
    %148 = vector.extract_strided_slice %136 {offsets = [0, 32], sizes = [4, 32], strides = [1, 1]} : vector<4x96xf32> to vector<4x32xf32>
    %149 = arith.addf %147, %148 : vector<4x32xf32>
    %150 = arith.negf %149 : vector<4x32xf32>
    %151 = math.exp %150 : vector<4x32xf32>
    %cst_44 = arith.constant 1.000000e+00 : f32
    %152 = vector.broadcast %cst_44 : f32 to vector<4x32xf32>
    %153 = arith.addf %152, %151 : vector<4x32xf32>
    %154 = arith.divf %152, %153 : vector<4x32xf32>
    %155 = vector.extract_strided_slice %138 {offsets = [0, 64], sizes = [4, 32], strides = [1, 1]} : vector<4x96xf32> to vector<4x32xf32>
    %156 = vector.extract_strided_slice %136 {offsets = [0, 64], sizes = [4, 32], strides = [1, 1]} : vector<4x96xf32> to vector<4x32xf32>
    %157 = arith.addf %156, %16 : vector<4x32xf32>
    %158 = arith.mulf %146, %157 : vector<4x32xf32>
    %159 = arith.addf %155, %158 : vector<4x32xf32>
    %160 = math.tanh %159 : vector<4x32xf32>
    %161 = arith.subf %107, %160 : vector<4x32xf32>
    %162 = arith.mulf %154, %161 : vector<4x32xf32>
    %163 = arith.addf %160, %162 : vector<4x32xf32>
    %164 = vector.extract_strided_slice %11 {offsets = [20, 0], sizes = [4, 96], strides = [1, 1]} : vector<32x96xf32> to vector<4x96xf32>
    %165 = vector.extract_strided_slice %164 {offsets = [0, 0], sizes = [4, 32], strides = [1, 1]} : vector<4x96xf32> to vector<4x32xf32>
    %166 = vector.extract_strided_slice %137 {offsets = [0, 0], sizes = [4, 32], strides = [1, 1]} : vector<4x96xf32> to vector<4x32xf32>
    %167 = arith.addf %165, %166 : vector<4x32xf32>
    %168 = arith.negf %167 : vector<4x32xf32>
    %169 = math.exp %168 : vector<4x32xf32>
    %cst_45 = arith.constant 1.000000e+00 : f32
    %170 = vector.broadcast %cst_45 : f32 to vector<4x32xf32>
    %171 = arith.addf %170, %169 : vector<4x32xf32>
    %172 = arith.divf %170, %171 : vector<4x32xf32>
    %173 = vector.extract_strided_slice %164 {offsets = [0, 32], sizes = [4, 32], strides = [1, 1]} : vector<4x96xf32> to vector<4x32xf32>
    %174 = vector.extract_strided_slice %137 {offsets = [0, 32], sizes = [4, 32], strides = [1, 1]} : vector<4x96xf32> to vector<4x32xf32>
    %175 = arith.addf %173, %174 : vector<4x32xf32>
    %176 = arith.negf %175 : vector<4x32xf32>
    %177 = math.exp %176 : vector<4x32xf32>
    %cst_46 = arith.constant 1.000000e+00 : f32
    %178 = vector.broadcast %cst_46 : f32 to vector<4x32xf32>
    %179 = arith.addf %178, %177 : vector<4x32xf32>
    %180 = arith.divf %178, %179 : vector<4x32xf32>
    %181 = vector.extract_strided_slice %164 {offsets = [0, 64], sizes = [4, 32], strides = [1, 1]} : vector<4x96xf32> to vector<4x32xf32>
    %182 = vector.extract_strided_slice %137 {offsets = [0, 64], sizes = [4, 32], strides = [1, 1]} : vector<4x96xf32> to vector<4x32xf32>
    %183 = arith.addf %182, %19 : vector<4x32xf32>
    %184 = arith.mulf %172, %183 : vector<4x32xf32>
    %185 = arith.addf %181, %184 : vector<4x32xf32>
    %186 = math.tanh %185 : vector<4x32xf32>
    %187 = arith.subf %133, %186 : vector<4x32xf32>
    %188 = arith.mulf %180, %187 : vector<4x32xf32>
    %189 = arith.addf %186, %188 : vector<4x32xf32>
    %c8 = arith.constant 8 : index
    %c0_47 = arith.constant 0 : index
    %190 = vector.load %arg10[%c8, %c0_47] : memref<32x64xf32, #tpu.memory_space<vmem>>, vector<4x32xf32>
    tpu.vector_store %arg10[%c8, %c0_47], %163 {strides = array<i32>} : memref<32x64xf32, #tpu.memory_space<vmem>>, vector<4x32xf32>,
    %c20 = arith.constant 20 : index
    %c32_48 = arith.constant 32 : index
    %191 = vector.load %arg10[%c20, %c32_48] : memref<32x64xf32, #tpu.memory_space<vmem>>, vector<4x32xf32>
    tpu.vector_store %arg10[%c20, %c32_48], %189 {strides = array<i32>} : memref<32x64xf32, #tpu.memory_space<vmem>>, vector<4x32xf32>,
    %cst_49 = arith.constant dense<0.000000e+00> : vector<4x96xf32>
    %192 = tpu.matmul %163, %12, %cst_49 {dimension_numbers = #tpu.dot_dimension_numbers<[1], [0], [0], [1], [0, 0, 1, 1], [], []>} : vector<4x32xf32>, vector<32x96xf32>, vector<4x96xf32> -> vector<4x96xf32>
    %cst_50 = arith.constant dense<0.000000e+00> : vector<4x96xf32>
    %193 = tpu.matmul %189, %13, %cst_50 {dimension_numbers = #tpu.dot_dimension_numbers<[1], [0], [0], [1], [0, 0, 1, 1], [], []>} : vector<4x32xf32>, vector<32x96xf32>, vector<4x96xf32> -> vector<4x96xf32>
    %194 = vector.extract_strided_slice %5 {offsets = [12, 0], sizes = [4, 96], strides = [1, 1]} : vector<32x96xf32> to vector<4x96xf32>
    %195 = vector.extract_strided_slice %194 {offsets = [0, 0], sizes = [4, 32], strides = [1, 1]} : vector<4x96xf32> to vector<4x32xf32>
    %196 = vector.extract_strided_slice %192 {offsets = [0, 0], sizes = [4, 32], strides = [1, 1]} : vector<4x96xf32> to vector<4x32xf32>
    %197 = arith.addf %195, %196 : vector<4x32xf32>
    %198 = arith.negf %197 : vector<4x32xf32>
    %199 = math.exp %198 : vector<4x32xf32>
    %cst_51 = arith.constant 1.000000e+00 : f32
    %200 = vector.broadcast %cst_51 : f32 to vector<4x32xf32>
    %201 = arith.addf %200, %199 : vector<4x32xf32>
    %202 = arith.divf %200, %201 : vector<4x32xf32>
    %203 = vector.extract_strided_slice %194 {offsets = [0, 32], sizes = [4, 32], strides = [1, 1]} : vector<4x96xf32> to vector<4x32xf32>
    %204 = vector.extract_strided_slice %192 {offsets = [0, 32], sizes = [4, 32], strides = [1, 1]} : vector<4x96xf32> to vector<4x32xf32>
    %205 = arith.addf %203, %204 : vector<4x32xf32>
    %206 = arith.negf %205 : vector<4x32xf32>
    %207 = math.exp %206 : vector<4x32xf32>
    %cst_52 = arith.constant 1.000000e+00 : f32
    %208 = vector.broadcast %cst_52 : f32 to vector<4x32xf32>
    %209 = arith.addf %208, %207 : vector<4x32xf32>
    %210 = arith.divf %208, %209 : vector<4x32xf32>
    %211 = vector.extract_strided_slice %194 {offsets = [0, 64], sizes = [4, 32], strides = [1, 1]} : vector<4x96xf32> to vector<4x32xf32>
    %212 = vector.extract_strided_slice %192 {offsets = [0, 64], sizes = [4, 32], strides = [1, 1]} : vector<4x96xf32> to vector<4x32xf32>
    %213 = arith.addf %212, %16 : vector<4x32xf32>
    %214 = arith.mulf %202, %213 : vector<4x32xf32>
    %215 = arith.addf %211, %214 : vector<4x32xf32>
    %216 = math.tanh %215 : vector<4x32xf32>
    %217 = arith.subf %163, %216 : vector<4x32xf32>
    %218 = arith.mulf %210, %217 : vector<4x32xf32>
    %219 = arith.addf %216, %218 : vector<4x32xf32>
    %220 = vector.extract_strided_slice %11 {offsets = [16, 0], sizes = [4, 96], strides = [1, 1]} : vector<32x96xf32> to vector<4x96xf32>
    %221 = vector.extract_strided_slice %220 {offsets = [0, 0], sizes = [4, 32], strides = [1, 1]} : vector<4x96xf32> to vector<4x32xf32>
    %222 = vector.extract_strided_slice %193 {offsets = [0, 0], sizes = [4, 32], strides = [1, 1]} : vector<4x96xf32> to vector<4x32xf32>
    %223 = arith.addf %221, %222 : vector<4x32xf32>
    %224 = arith.negf %223 : vector<4x32xf32>
    %225 = math.exp %224 : vector<4x32xf32>
    %cst_53 = arith.constant 1.000000e+00 : f32
    %226 = vector.broadcast %cst_53 : f32 to vector<4x32xf32>
    %227 = arith.addf %226, %225 : vector<4x32xf32>
    %228 = arith.divf %226, %227 : vector<4x32xf32>
    %229 = vector.extract_strided_slice %220 {offsets = [0, 32], sizes = [4, 32], strides = [1, 1]} : vector<4x96xf32> to vector<4x32xf32>
    %230 = vector.extract_strided_slice %193 {offsets = [0, 32], sizes = [4, 32], strides = [1, 1]} : vector<4x96xf32> to vector<4x32xf32>
    %231 = arith.addf %229, %230 : vector<4x32xf32>
    %232 = arith.negf %231 : vector<4x32xf32>
    %233 = math.exp %232 : vector<4x32xf32>
    %cst_54 = arith.constant 1.000000e+00 : f32
    %234 = vector.broadcast %cst_54 : f32 to vector<4x32xf32>
    %235 = arith.addf %234, %233 : vector<4x32xf32>
    %236 = arith.divf %234, %235 : vector<4x32xf32>
    %237 = vector.extract_strided_slice %220 {offsets = [0, 64], sizes = [4, 32], strides = [1, 1]} : vector<4x96xf32> to vector<4x32xf32>
    %238 = vector.extract_strided_slice %193 {offsets = [0, 64], sizes = [4, 32], strides = [1, 1]} : vector<4x96xf32> to vector<4x32xf32>
    %239 = arith.addf %238, %19 : vector<4x32xf32>
    %240 = arith.mulf %228, %239 : vector<4x32xf32>
    %241 = arith.addf %237, %240 : vector<4x32xf32>
    %242 = math.tanh %241 : vector<4x32xf32>
    %243 = arith.subf %189, %242 : vector<4x32xf32>
    %244 = arith.mulf %236, %243 : vector<4x32xf32>
    %245 = arith.addf %242, %244 : vector<4x32xf32>
    %c12 = arith.constant 12 : index
    %c0_55 = arith.constant 0 : index
    %246 = vector.load %arg10[%c12, %c0_55] : memref<32x64xf32, #tpu.memory_space<vmem>>, vector<4x32xf32>
    tpu.vector_store %arg10[%c12, %c0_55], %219 {strides = array<i32>} : memref<32x64xf32, #tpu.memory_space<vmem>>, vector<4x32xf32>,
    %c16 = arith.constant 16 : index
    %c32_56 = arith.constant 32 : index
    %247 = vector.load %arg10[%c16, %c32_56] : memref<32x64xf32, #tpu.memory_space<vmem>>, vector<4x32xf32>
    tpu.vector_store %arg10[%c16, %c32_56], %245 {strides = array<i32>} : memref<32x64xf32, #tpu.memory_space<vmem>>, vector<4x32xf32>,
    %cst_57 = arith.constant dense<0.000000e+00> : vector<4x96xf32>
    %248 = tpu.matmul %219, %12, %cst_57 {dimension_numbers = #tpu.dot_dimension_numbers<[1], [0], [0], [1], [0, 0, 1, 1], [], []>} : vector<4x32xf32>, vector<32x96xf32>, vector<4x96xf32> -> vector<4x96xf32>
    %cst_58 = arith.constant dense<0.000000e+00> : vector<4x96xf32>
    %249 = tpu.matmul %245, %13, %cst_58 {dimension_numbers = #tpu.dot_dimension_numbers<[1], [0], [0], [1], [0, 0, 1, 1], [], []>} : vector<4x32xf32>, vector<32x96xf32>, vector<4x96xf32> -> vector<4x96xf32>
    %250 = vector.extract_strided_slice %5 {offsets = [16, 0], sizes = [4, 96], strides = [1, 1]} : vector<32x96xf32> to vector<4x96xf32>
    %251 = vector.extract_strided_slice %250 {offsets = [0, 0], sizes = [4, 32], strides = [1, 1]} : vector<4x96xf32> to vector<4x32xf32>
    %252 = vector.extract_strided_slice %248 {offsets = [0, 0], sizes = [4, 32], strides = [1, 1]} : vector<4x96xf32> to vector<4x32xf32>
    %253 = arith.addf %251, %252 : vector<4x32xf32>
    %254 = arith.negf %253 : vector<4x32xf32>
    %255 = math.exp %254 : vector<4x32xf32>
    %cst_59 = arith.constant 1.000000e+00 : f32
    %256 = vector.broadcast %cst_59 : f32 to vector<4x32xf32>
    %257 = arith.addf %256, %255 : vector<4x32xf32>
    %258 = arith.divf %256, %257 : vector<4x32xf32>
    %259 = vector.extract_strided_slice %250 {offsets = [0, 32], sizes = [4, 32], strides = [1, 1]} : vector<4x96xf32> to vector<4x32xf32>
    %260 = vector.extract_strided_slice %248 {offsets = [0, 32], sizes = [4, 32], strides = [1, 1]} : vector<4x96xf32> to vector<4x32xf32>
    %261 = arith.addf %259, %260 : vector<4x32xf32>
    %262 = arith.negf %261 : vector<4x32xf32>
    %263 = math.exp %262 : vector<4x32xf32>
    %cst_60 = arith.constant 1.000000e+00 : f32
    %264 = vector.broadcast %cst_60 : f32 to vector<4x32xf32>
    %265 = arith.addf %264, %263 : vector<4x32xf32>
    %266 = arith.divf %264, %265 : vector<4x32xf32>
    %267 = vector.extract_strided_slice %250 {offsets = [0, 64], sizes = [4, 32], strides = [1, 1]} : vector<4x96xf32> to vector<4x32xf32>
    %268 = vector.extract_strided_slice %248 {offsets = [0, 64], sizes = [4, 32], strides = [1, 1]} : vector<4x96xf32> to vector<4x32xf32>
    %269 = arith.addf %268, %16 : vector<4x32xf32>
    %270 = arith.mulf %258, %269 : vector<4x32xf32>
    %271 = arith.addf %267, %270 : vector<4x32xf32>
    %272 = math.tanh %271 : vector<4x32xf32>
    %273 = arith.subf %219, %272 : vector<4x32xf32>
    %274 = arith.mulf %266, %273 : vector<4x32xf32>
    %275 = arith.addf %272, %274 : vector<4x32xf32>
    %276 = vector.extract_strided_slice %11 {offsets = [12, 0], sizes = [4, 96], strides = [1, 1]} : vector<32x96xf32> to vector<4x96xf32>
    %277 = vector.extract_strided_slice %276 {offsets = [0, 0], sizes = [4, 32], strides = [1, 1]} : vector<4x96xf32> to vector<4x32xf32>
    %278 = vector.extract_strided_slice %249 {offsets = [0, 0], sizes = [4, 32], strides = [1, 1]} : vector<4x96xf32> to vector<4x32xf32>
    %279 = arith.addf %277, %278 : vector<4x32xf32>
    %280 = arith.negf %279 : vector<4x32xf32>
    %281 = math.exp %280 : vector<4x32xf32>
    %cst_61 = arith.constant 1.000000e+00 : f32
    %282 = vector.broadcast %cst_61 : f32 to vector<4x32xf32>
    %283 = arith.addf %282, %281 : vector<4x32xf32>
    %284 = arith.divf %282, %283 : vector<4x32xf32>
    %285 = vector.extract_strided_slice %276 {offsets = [0, 32], sizes = [4, 32], strides = [1, 1]} : vector<4x96xf32> to vector<4x32xf32>
    %286 = vector.extract_strided_slice %249 {offsets = [0, 32], sizes = [4, 32], strides = [1, 1]} : vector<4x96xf32> to vector<4x32xf32>
    %287 = arith.addf %285, %286 : vector<4x32xf32>
    %288 = arith.negf %287 : vector<4x32xf32>
    %289 = math.exp %288 : vector<4x32xf32>
    %cst_62 = arith.constant 1.000000e+00 : f32
    %290 = vector.broadcast %cst_62 : f32 to vector<4x32xf32>
    %291 = arith.addf %290, %289 : vector<4x32xf32>
    %292 = arith.divf %290, %291 : vector<4x32xf32>
    %293 = vector.extract_strided_slice %276 {offsets = [0, 64], sizes = [4, 32], strides = [1, 1]} : vector<4x96xf32> to vector<4x32xf32>
    %294 = vector.extract_strided_slice %249 {offsets = [0, 64], sizes = [4, 32], strides = [1, 1]} : vector<4x96xf32> to vector<4x32xf32>
    %295 = arith.addf %294, %19 : vector<4x32xf32>
    %296 = arith.mulf %284, %295 : vector<4x32xf32>
    %297 = arith.addf %293, %296 : vector<4x32xf32>
    %298 = math.tanh %297 : vector<4x32xf32>
    %299 = arith.subf %245, %298 : vector<4x32xf32>
    %300 = arith.mulf %292, %299 : vector<4x32xf32>
    %301 = arith.addf %298, %300 : vector<4x32xf32>
    %c16_63 = arith.constant 16 : index
    %c0_64 = arith.constant 0 : index
    %302 = vector.load %arg10[%c16_63, %c0_64] : memref<32x64xf32, #tpu.memory_space<vmem>>, vector<4x32xf32>
    tpu.vector_store %arg10[%c16_63, %c0_64], %275 {strides = array<i32>} : memref<32x64xf32, #tpu.memory_space<vmem>>, vector<4x32xf32>,
    %c12_65 = arith.constant 12 : index
    %c32_66 = arith.constant 32 : index
    %303 = vector.load %arg10[%c12_65, %c32_66] : memref<32x64xf32, #tpu.memory_space<vmem>>, vector<4x32xf32>
    tpu.vector_store %arg10[%c12_65, %c32_66], %301 {strides = array<i32>} : memref<32x64xf32, #tpu.memory_space<vmem>>, vector<4x32xf32>,
    %cst_67 = arith.constant dense<0.000000e+00> : vector<4x96xf32>
    %304 = tpu.matmul %275, %12, %cst_67 {dimension_numbers = #tpu.dot_dimension_numbers<[1], [0], [0], [1], [0, 0, 1, 1], [], []>} : vector<4x32xf32>, vector<32x96xf32>, vector<4x96xf32> -> vector<4x96xf32>
    %cst_68 = arith.constant dense<0.000000e+00> : vector<4x96xf32>
    %305 = tpu.matmul %301, %13, %cst_68 {dimension_numbers = #tpu.dot_dimension_numbers<[1], [0], [0], [1], [0, 0, 1, 1], [], []>} : vector<4x32xf32>, vector<32x96xf32>, vector<4x96xf32> -> vector<4x96xf32>
    %306 = vector.extract_strided_slice %5 {offsets = [20, 0], sizes = [4, 96], strides = [1, 1]} : vector<32x96xf32> to vector<4x96xf32>
    %307 = vector.extract_strided_slice %306 {offsets = [0, 0], sizes = [4, 32], strides = [1, 1]} : vector<4x96xf32> to vector<4x32xf32>
    %308 = vector.extract_strided_slice %304 {offsets = [0, 0], sizes = [4, 32], strides = [1, 1]} : vector<4x96xf32> to vector<4x32xf32>
    %309 = arith.addf %307, %308 : vector<4x32xf32>
    %310 = arith.negf %309 : vector<4x32xf32>
    %311 = math.exp %310 : vector<4x32xf32>
    %cst_69 = arith.constant 1.000000e+00 : f32
    %312 = vector.broadcast %cst_69 : f32 to vector<4x32xf32>
    %313 = arith.addf %312, %311 : vector<4x32xf32>
    %314 = arith.divf %312, %313 : vector<4x32xf32>
    %315 = vector.extract_strided_slice %306 {offsets = [0, 32], sizes = [4, 32], strides = [1, 1]} : vector<4x96xf32> to vector<4x32xf32>
    %316 = vector.extract_strided_slice %304 {offsets = [0, 32], sizes = [4, 32], strides = [1, 1]} : vector<4x96xf32> to vector<4x32xf32>
    %317 = arith.addf %315, %316 : vector<4x32xf32>
    %318 = arith.negf %317 : vector<4x32xf32>
    %319 = math.exp %318 : vector<4x32xf32>
    %cst_70 = arith.constant 1.000000e+00 : f32
    %320 = vector.broadcast %cst_70 : f32 to vector<4x32xf32>
    %321 = arith.addf %320, %319 : vector<4x32xf32>
    %322 = arith.divf %320, %321 : vector<4x32xf32>
    %323 = vector.extract_strided_slice %306 {offsets = [0, 64], sizes = [4, 32], strides = [1, 1]} : vector<4x96xf32> to vector<4x32xf32>
    %324 = vector.extract_strided_slice %304 {offsets = [0, 64], sizes = [4, 32], strides = [1, 1]} : vector<4x96xf32> to vector<4x32xf32>
    %325 = arith.addf %324, %16 : vector<4x32xf32>
    %326 = arith.mulf %314, %325 : vector<4x32xf32>
    %327 = arith.addf %323, %326 : vector<4x32xf32>
    %328 = math.tanh %327 : vector<4x32xf32>
    %329 = arith.subf %275, %328 : vector<4x32xf32>
    %330 = arith.mulf %322, %329 : vector<4x32xf32>
    %331 = arith.addf %328, %330 : vector<4x32xf32>
    %332 = vector.extract_strided_slice %11 {offsets = [8, 0], sizes = [4, 96], strides = [1, 1]} : vector<32x96xf32> to vector<4x96xf32>
    %333 = vector.extract_strided_slice %332 {offsets = [0, 0], sizes = [4, 32], strides = [1, 1]} : vector<4x96xf32> to vector<4x32xf32>
    %334 = vector.extract_strided_slice %305 {offsets = [0, 0], sizes = [4, 32], strides = [1, 1]} : vector<4x96xf32> to vector<4x32xf32>
    %335 = arith.addf %333, %334 : vector<4x32xf32>
    %336 = arith.negf %335 : vector<4x32xf32>
    %337 = math.exp %336 : vector<4x32xf32>
    %cst_71 = arith.constant 1.000000e+00 : f32
    %338 = vector.broadcast %cst_71 : f32 to vector<4x32xf32>
    %339 = arith.addf %338, %337 : vector<4x32xf32>
    %340 = arith.divf %338, %339 : vector<4x32xf32>
    %341 = vector.extract_strided_slice %332 {offsets = [0, 32], sizes = [4, 32], strides = [1, 1]} : vector<4x96xf32> to vector<4x32xf32>
    %342 = vector.extract_strided_slice %305 {offsets = [0, 32], sizes = [4, 32], strides = [1, 1]} : vector<4x96xf32> to vector<4x32xf32>
    %343 = arith.addf %341, %342 : vector<4x32xf32>
    %344 = arith.negf %343 : vector<4x32xf32>
    %345 = math.exp %344 : vector<4x32xf32>
    %cst_72 = arith.constant 1.000000e+00 : f32
    %346 = vector.broadcast %cst_72 : f32 to vector<4x32xf32>
    %347 = arith.addf %346, %345 : vector<4x32xf32>
    %348 = arith.divf %346, %347 : vector<4x32xf32>
    %349 = vector.extract_strided_slice %332 {offsets = [0, 64], sizes = [4, 32], strides = [1, 1]} : vector<4x96xf32> to vector<4x32xf32>
    %350 = vector.extract_strided_slice %305 {offsets = [0, 64], sizes = [4, 32], strides = [1, 1]} : vector<4x96xf32> to vector<4x32xf32>
    %351 = arith.addf %350, %19 : vector<4x32xf32>
    %352 = arith.mulf %340, %351 : vector<4x32xf32>
    %353 = arith.addf %349, %352 : vector<4x32xf32>
    %354 = math.tanh %353 : vector<4x32xf32>
    %355 = arith.subf %301, %354 : vector<4x32xf32>
    %356 = arith.mulf %348, %355 : vector<4x32xf32>
    %357 = arith.addf %354, %356 : vector<4x32xf32>
    %c20_73 = arith.constant 20 : index
    %c0_74 = arith.constant 0 : index
    %358 = vector.load %arg10[%c20_73, %c0_74] : memref<32x64xf32, #tpu.memory_space<vmem>>, vector<4x32xf32>
    tpu.vector_store %arg10[%c20_73, %c0_74], %331 {strides = array<i32>} : memref<32x64xf32, #tpu.memory_space<vmem>>, vector<4x32xf32>,
    %c8_75 = arith.constant 8 : index
    %c32_76 = arith.constant 32 : index
    %359 = vector.load %arg10[%c8_75, %c32_76] : memref<32x64xf32, #tpu.memory_space<vmem>>, vector<4x32xf32>
    tpu.vector_store %arg10[%c8_75, %c32_76], %357 {strides = array<i32>} : memref<32x64xf32, #tpu.memory_space<vmem>>, vector<4x32xf32>,
    %cst_77 = arith.constant dense<0.000000e+00> : vector<4x96xf32>
    %360 = tpu.matmul %331, %12, %cst_77 {dimension_numbers = #tpu.dot_dimension_numbers<[1], [0], [0], [1], [0, 0, 1, 1], [], []>} : vector<4x32xf32>, vector<32x96xf32>, vector<4x96xf32> -> vector<4x96xf32>
    %cst_78 = arith.constant dense<0.000000e+00> : vector<4x96xf32>
    %361 = tpu.matmul %357, %13, %cst_78 {dimension_numbers = #tpu.dot_dimension_numbers<[1], [0], [0], [1], [0, 0, 1, 1], [], []>} : vector<4x32xf32>, vector<32x96xf32>, vector<4x96xf32> -> vector<4x96xf32>
    %362 = vector.extract_strided_slice %5 {offsets = [24, 0], sizes = [4, 96], strides = [1, 1]} : vector<32x96xf32> to vector<4x96xf32>
    %363 = vector.extract_strided_slice %362 {offsets = [0, 0], sizes = [4, 32], strides = [1, 1]} : vector<4x96xf32> to vector<4x32xf32>
    %364 = vector.extract_strided_slice %360 {offsets = [0, 0], sizes = [4, 32], strides = [1, 1]} : vector<4x96xf32> to vector<4x32xf32>
    %365 = arith.addf %363, %364 : vector<4x32xf32>
    %366 = arith.negf %365 : vector<4x32xf32>
    %367 = math.exp %366 : vector<4x32xf32>
    %cst_79 = arith.constant 1.000000e+00 : f32
    %368 = vector.broadcast %cst_79 : f32 to vector<4x32xf32>
    %369 = arith.addf %368, %367 : vector<4x32xf32>
    %370 = arith.divf %368, %369 : vector<4x32xf32>
    %371 = vector.extract_strided_slice %362 {offsets = [0, 32], sizes = [4, 32], strides = [1, 1]} : vector<4x96xf32> to vector<4x32xf32>
    %372 = vector.extract_strided_slice %360 {offsets = [0, 32], sizes = [4, 32], strides = [1, 1]} : vector<4x96xf32> to vector<4x32xf32>
    %373 = arith.addf %371, %372 : vector<4x32xf32>
    %374 = arith.negf %373 : vector<4x32xf32>
    %375 = math.exp %374 : vector<4x32xf32>
    %cst_80 = arith.constant 1.000000e+00 : f32
    %376 = vector.broadcast %cst_80 : f32 to vector<4x32xf32>
    %377 = arith.addf %376, %375 : vector<4x32xf32>
    %378 = arith.divf %376, %377 : vector<4x32xf32>
    %379 = vector.extract_strided_slice %362 {offsets = [0, 64], sizes = [4, 32], strides = [1, 1]} : vector<4x96xf32> to vector<4x32xf32>
    %380 = vector.extract_strided_slice %360 {offsets = [0, 64], sizes = [4, 32], strides = [1, 1]} : vector<4x96xf32> to vector<4x32xf32>
    %381 = arith.addf %380, %16 : vector<4x32xf32>
    %382 = arith.mulf %370, %381 : vector<4x32xf32>
    %383 = arith.addf %379, %382 : vector<4x32xf32>
    %384 = math.tanh %383 : vector<4x32xf32>
    %385 = arith.subf %331, %384 : vector<4x32xf32>
    %386 = arith.mulf %378, %385 : vector<4x32xf32>
    %387 = arith.addf %384, %386 : vector<4x32xf32>
    %388 = vector.extract_strided_slice %11 {offsets = [4, 0], sizes = [4, 96], strides = [1, 1]} : vector<32x96xf32> to vector<4x96xf32>
    %389 = vector.extract_strided_slice %388 {offsets = [0, 0], sizes = [4, 32], strides = [1, 1]} : vector<4x96xf32> to vector<4x32xf32>
    %390 = vector.extract_strided_slice %361 {offsets = [0, 0], sizes = [4, 32], strides = [1, 1]} : vector<4x96xf32> to vector<4x32xf32>
    %391 = arith.addf %389, %390 : vector<4x32xf32>
    %392 = arith.negf %391 : vector<4x32xf32>
    %393 = math.exp %392 : vector<4x32xf32>
    %cst_81 = arith.constant 1.000000e+00 : f32
    %394 = vector.broadcast %cst_81 : f32 to vector<4x32xf32>
    %395 = arith.addf %394, %393 : vector<4x32xf32>
    %396 = arith.divf %394, %395 : vector<4x32xf32>
    %397 = vector.extract_strided_slice %388 {offsets = [0, 32], sizes = [4, 32], strides = [1, 1]} : vector<4x96xf32> to vector<4x32xf32>
    %398 = vector.extract_strided_slice %361 {offsets = [0, 32], sizes = [4, 32], strides = [1, 1]} : vector<4x96xf32> to vector<4x32xf32>
    %399 = arith.addf %397, %398 : vector<4x32xf32>
    %400 = arith.negf %399 : vector<4x32xf32>
    %401 = math.exp %400 : vector<4x32xf32>
    %cst_82 = arith.constant 1.000000e+00 : f32
    %402 = vector.broadcast %cst_82 : f32 to vector<4x32xf32>
    %403 = arith.addf %402, %401 : vector<4x32xf32>
    %404 = arith.divf %402, %403 : vector<4x32xf32>
    %405 = vector.extract_strided_slice %388 {offsets = [0, 64], sizes = [4, 32], strides = [1, 1]} : vector<4x96xf32> to vector<4x32xf32>
    %406 = vector.extract_strided_slice %361 {offsets = [0, 64], sizes = [4, 32], strides = [1, 1]} : vector<4x96xf32> to vector<4x32xf32>
    %407 = arith.addf %406, %19 : vector<4x32xf32>
    %408 = arith.mulf %396, %407 : vector<4x32xf32>
    %409 = arith.addf %405, %408 : vector<4x32xf32>
    %410 = math.tanh %409 : vector<4x32xf32>
    %411 = arith.subf %357, %410 : vector<4x32xf32>
    %412 = arith.mulf %404, %411 : vector<4x32xf32>
    %413 = arith.addf %410, %412 : vector<4x32xf32>
    %c24_83 = arith.constant 24 : index
    %c0_84 = arith.constant 0 : index
    %414 = vector.load %arg10[%c24_83, %c0_84] : memref<32x64xf32, #tpu.memory_space<vmem>>, vector<4x32xf32>
    tpu.vector_store %arg10[%c24_83, %c0_84], %387 {strides = array<i32>} : memref<32x64xf32, #tpu.memory_space<vmem>>, vector<4x32xf32>,
    %c4_85 = arith.constant 4 : index
    %c32_86 = arith.constant 32 : index
    %415 = vector.load %arg10[%c4_85, %c32_86] : memref<32x64xf32, #tpu.memory_space<vmem>>, vector<4x32xf32>
    tpu.vector_store %arg10[%c4_85, %c32_86], %413 {strides = array<i32>} : memref<32x64xf32, #tpu.memory_space<vmem>>, vector<4x32xf32>,
    %cst_87 = arith.constant dense<0.000000e+00> : vector<4x96xf32>
    %416 = tpu.matmul %387, %12, %cst_87 {dimension_numbers = #tpu.dot_dimension_numbers<[1], [0], [0], [1], [0, 0, 1, 1], [], []>} : vector<4x32xf32>, vector<32x96xf32>, vector<4x96xf32> -> vector<4x96xf32>
    %cst_88 = arith.constant dense<0.000000e+00> : vector<4x96xf32>
    %417 = tpu.matmul %413, %13, %cst_88 {dimension_numbers = #tpu.dot_dimension_numbers<[1], [0], [0], [1], [0, 0, 1, 1], [], []>} : vector<4x32xf32>, vector<32x96xf32>, vector<4x96xf32> -> vector<4x96xf32>
    %418 = vector.extract_strided_slice %5 {offsets = [28, 0], sizes = [4, 96], strides = [1, 1]} : vector<32x96xf32> to vector<4x96xf32>
    %419 = vector.extract_strided_slice %418 {offsets = [0, 0], sizes = [4, 32], strides = [1, 1]} : vector<4x96xf32> to vector<4x32xf32>
    %420 = vector.extract_strided_slice %416 {offsets = [0, 0], sizes = [4, 32], strides = [1, 1]} : vector<4x96xf32> to vector<4x32xf32>
    %421 = arith.addf %419, %420 : vector<4x32xf32>
    %422 = arith.negf %421 : vector<4x32xf32>
    %423 = math.exp %422 : vector<4x32xf32>
    %cst_89 = arith.constant 1.000000e+00 : f32
    %424 = vector.broadcast %cst_89 : f32 to vector<4x32xf32>
    %425 = arith.addf %424, %423 : vector<4x32xf32>
    %426 = arith.divf %424, %425 : vector<4x32xf32>
    %427 = vector.extract_strided_slice %418 {offsets = [0, 32], sizes = [4, 32], strides = [1, 1]} : vector<4x96xf32> to vector<4x32xf32>
    %428 = vector.extract_strided_slice %416 {offsets = [0, 32], sizes = [4, 32], strides = [1, 1]} : vector<4x96xf32> to vector<4x32xf32>
    %429 = arith.addf %427, %428 : vector<4x32xf32>
    %430 = arith.negf %429 : vector<4x32xf32>
    %431 = math.exp %430 : vector<4x32xf32>
    %cst_90 = arith.constant 1.000000e+00 : f32
    %432 = vector.broadcast %cst_90 : f32 to vector<4x32xf32>
    %433 = arith.addf %432, %431 : vector<4x32xf32>
    %434 = arith.divf %432, %433 : vector<4x32xf32>
    %435 = vector.extract_strided_slice %418 {offsets = [0, 64], sizes = [4, 32], strides = [1, 1]} : vector<4x96xf32> to vector<4x32xf32>
    %436 = vector.extract_strided_slice %416 {offsets = [0, 64], sizes = [4, 32], strides = [1, 1]} : vector<4x96xf32> to vector<4x32xf32>
    %437 = arith.addf %436, %16 : vector<4x32xf32>
    %438 = arith.mulf %426, %437 : vector<4x32xf32>
    %439 = arith.addf %435, %438 : vector<4x32xf32>
    %440 = math.tanh %439 : vector<4x32xf32>
    %441 = arith.subf %387, %440 : vector<4x32xf32>
    %442 = arith.mulf %434, %441 : vector<4x32xf32>
    %443 = arith.addf %440, %442 : vector<4x32xf32>
    %444 = vector.extract_strided_slice %11 {offsets = [0, 0], sizes = [4, 96], strides = [1, 1]} : vector<32x96xf32> to vector<4x96xf32>
    %445 = vector.extract_strided_slice %444 {offsets = [0, 0], sizes = [4, 32], strides = [1, 1]} : vector<4x96xf32> to vector<4x32xf32>
    %446 = vector.extract_strided_slice %417 {offsets = [0, 0], sizes = [4, 32], strides = [1, 1]} : vector<4x96xf32> to vector<4x32xf32>
    %447 = arith.addf %445, %446 : vector<4x32xf32>
    %448 = arith.negf %447 : vector<4x32xf32>
    %449 = math.exp %448 : vector<4x32xf32>
    %cst_91 = arith.constant 1.000000e+00 : f32
    %450 = vector.broadcast %cst_91 : f32 to vector<4x32xf32>
    %451 = arith.addf %450, %449 : vector<4x32xf32>
    %452 = arith.divf %450, %451 : vector<4x32xf32>
    %453 = vector.extract_strided_slice %444 {offsets = [0, 32], sizes = [4, 32], strides = [1, 1]} : vector<4x96xf32> to vector<4x32xf32>
    %454 = vector.extract_strided_slice %417 {offsets = [0, 32], sizes = [4, 32], strides = [1, 1]} : vector<4x96xf32> to vector<4x32xf32>
    %455 = arith.addf %453, %454 : vector<4x32xf32>
    %456 = arith.negf %455 : vector<4x32xf32>
    %457 = math.exp %456 : vector<4x32xf32>
    %cst_92 = arith.constant 1.000000e+00 : f32
    %458 = vector.broadcast %cst_92 : f32 to vector<4x32xf32>
    %459 = arith.addf %458, %457 : vector<4x32xf32>
    %460 = arith.divf %458, %459 : vector<4x32xf32>
    %461 = vector.extract_strided_slice %444 {offsets = [0, 64], sizes = [4, 32], strides = [1, 1]} : vector<4x96xf32> to vector<4x32xf32>
    %462 = vector.extract_strided_slice %417 {offsets = [0, 64], sizes = [4, 32], strides = [1, 1]} : vector<4x96xf32> to vector<4x32xf32>
    %463 = arith.addf %462, %19 : vector<4x32xf32>
    %464 = arith.mulf %452, %463 : vector<4x32xf32>
    %465 = arith.addf %461, %464 : vector<4x32xf32>
    %466 = math.tanh %465 : vector<4x32xf32>
    %467 = arith.subf %413, %466 : vector<4x32xf32>
    %468 = arith.mulf %460, %467 : vector<4x32xf32>
    %469 = arith.addf %466, %468 : vector<4x32xf32>
    %c28_93 = arith.constant 28 : index
    %c0_94 = arith.constant 0 : index
    %470 = vector.load %arg10[%c28_93, %c0_94] : memref<32x64xf32, #tpu.memory_space<vmem>>, vector<4x32xf32>
    tpu.vector_store %arg10[%c28_93, %c0_94], %443 {strides = array<i32>} : memref<32x64xf32, #tpu.memory_space<vmem>>, vector<4x32xf32>,
    %c0_95 = arith.constant 0 : index
    %c32_96 = arith.constant 32 : index
    %471 = vector.load %arg10[%c0_95, %c32_96] : memref<32x64xf32, #tpu.memory_space<vmem>>, vector<4x32xf32>
    tpu.vector_store %arg10[%c0_95, %c32_96], %469 {strides = array<i32>} : memref<32x64xf32, #tpu.memory_space<vmem>>, vector<4x32xf32>,
    %c0_97 = arith.constant 0 : index
    %c0_98 = arith.constant 0 : index
    %c0_99 = arith.constant 0 : index
    %472 = vector.load %arg11[%c0_97, %c0_98, %c0_99] : memref<2x4x32xf32, #tpu.memory_space<vmem>>, vector<1x4x32xf32>
    %473 = vector.shape_cast %472 : vector<1x4x32xf32> to vector<4x32xf32>
    %474 = vector.shape_cast %443 : vector<4x32xf32> to vector<1x4x32xf32>
    tpu.vector_store %arg11[%c0_97, %c0_98, %c0_99], %474 {strides = array<i32>} : memref<2x4x32xf32, #tpu.memory_space<vmem>>, vector<1x4x32xf32>,
    %c1_100 = arith.constant 1 : index
    %c0_101 = arith.constant 0 : index
    %c0_102 = arith.constant 0 : index
    %475 = vector.load %arg11[%c1_100, %c0_101, %c0_102] : memref<2x4x32xf32, #tpu.memory_space<vmem>>, vector<1x4x32xf32>
    %476 = vector.shape_cast %475 : vector<1x4x32xf32> to vector<4x32xf32>
    %477 = vector.shape_cast %469 : vector<4x32xf32> to vector<1x4x32xf32>
    tpu.vector_store %arg11[%c1_100, %c0_101, %c0_102], %477 {strides = array<i32>} : memref<2x4x32xf32, #tpu.memory_space<vmem>>, vector<1x4x32xf32>,
    return
  }
}

</mosaic_0001>

<llo_original>
// kernel: tpu_custom_call.1
$region0: #{tpu_custom_call.1}
  #allocation0 [shape = 'u32[]', space=smem, size = 0x4, offset = 0x4, fixed_abs, tag = 'smem constant byte address 0x4 - core index']
  #allocation1 [shape = 'u32[144,128]{1,0:T(1,128)}', space=vmem, size = 0x12000, scoped, tag = 'internal scratch']
  %s0 = inlined_call_operand.vmem [shape: f32[32,16], index: 0, kind: input, shape index: {}]
  %s1 = inlined_call_operand.vmem [shape: f32[2,4,32], index: 1, kind: input, shape index: {}]
  %s2 = inlined_call_operand.vmem [shape: f32[16,96], index: 2, kind: input, shape index: {}]
  %s3 = inlined_call_operand.hbm [shape: f32[16,96], index: 3, kind: input, shape index: {}]
  %s4 = inlined_call_operand.vmem [shape: f32[1,96], index: 4, kind: input, shape index: {}]
  %s5 = inlined_call_operand.vmem [shape: f32[1,96], index: 5, kind: input, shape index: {}]
  %s6 = inlined_call_operand.vmem [shape: f32[32,96], index: 6, kind: input, shape index: {}]
  %s7 = inlined_call_operand.hbm [shape: f32[32,96], index: 7, kind: input, shape index: {}]
  %s8 = inlined_call_operand.vmem [shape: f32[1,32], index: 8, kind: input, shape index: {}]
  %s9 = inlined_call_operand.vmem [shape: f32[1,32], index: 9, kind: input, shape index: {}]
  %s10 = inlined_call_operand.hbm [shape: f32[32,64], index: 10, kind: output, shape index: {0}]
  %s11 = inlined_call_operand.hbm [shape: f32[2,4,32], index: 11, kind: output, shape index: {1}]
  %12 = xla_tuple %s10, %s11
  %s13 = sld [smem:[#allocation0]]
  $region66: #{tpu_custom_call.1} parent=0
    _
  %s15 = ssub.s32 1, %s13
  %s16 = scalar_select 0, %s15, %s13
  $region1: #{tpu_custom_call.1} parent=0
    #allocation2 [shape = 'u8[8192]{0}', space=vmem, size = 0x2000, scoped, tag = 'input window, operand 3, single buffered']
    #allocation3 [shape = 's32[1]{0}', space=sflag, size = 0x4, scoped, tag = 'scoped memory for tpu_custom_call.1']
    #allocation4 [shape = 's32[1]{0}', space=sflag, size = 0x4, scoped, tag = 'scoped memory for tpu_custom_call.1']
    #allocation5 [shape = 'u8[16384]{0}', space=vmem, size = 0x4000, scoped, tag = 'input window, operand 7, single buffered']
    #allocation6 [shape = 's32[1]{0}', space=sflag, size = 0x4, scoped, tag = 'scoped memory for tpu_custom_call.1']
    #allocation7 [shape = 'u8[16384]{0}', space=vmem, size = 0x4000, scoped, tag = 'output window, operand 0, single buffered']
    #allocation8 [shape = 'u8[4096]{0}', space=vmem, size = 0x1000, scoped, tag = 'output window, operand 1, single buffered']
    #allocation9 [shape = 's32[1]{0}', space=sflag, size = 0x4, scoped, tag = 'scoped memory for tpu_custom_call.1']
    %17 = vsyncpa [#allocation3], 0
    %18 = vsyncpa [#allocation6], 0
    %19 = vsyncpa [#allocation4], 0
    %20 = vsyncpa [#allocation9], 0
    // Predicated region
    $region2: #{tpu_custom_call.1} parent=1 // pred_check
      _
    $region3: #{tpu_custom_call.1} parent=1 // pred_check_branch
      %22 = sbr.rel (0) target = $region5
    $region4: #{tpu_custom_call.1} parent=1 // pred_region
      _
    $region5: #{tpu_custom_call.1} parent=1 // pred_fallthru
      _
    // Predicated region
    $region6: #{tpu_custom_call.1} parent=1 // pred_check
      _
    $region7: #{tpu_custom_call.1} parent=1 // pred_check_branch
      %24 = sbr.rel (0) target = $region9
    $region8: #{tpu_custom_call.1} parent=1 // pred_region
      _
    $region9: #{tpu_custom_call.1} parent=1 // pred_fallthru
      _
    // Predicated region
    $region10: #{tpu_custom_call.1} parent=1 // pred_check
      _
    $region11: #{tpu_custom_call.1} parent=1 // pred_check_branch
      %26 = sbr.rel (0) target = $region13
    $region12: #{tpu_custom_call.1} parent=1 // pred_region
      _
    $region13: #{tpu_custom_call.1} parent=1 // pred_fallthru
      _
    // Predicated region
    $region14: #{tpu_custom_call.1} parent=1 // pred_check
      _
    $region15: #{tpu_custom_call.1} parent=1 // pred_check_branch
      %28 = sbr.rel (0) target = $region17
    $region16: #{tpu_custom_call.1} parent=1 // pred_region
      %s30 = ssub.s32 256, 256
      %31 = vsyncadd [#allocation3], %s30
      %s32 = sshll.u32 [#allocation2], 4
      %s33 = int_to_ptr.vmem [resolvable:$true] %s32
      %38 = dma.hbm_to_vmem [thread:$0]  %s3, 256, %s33, [#allocation3], 128, 128, 8
    $region17: #{tpu_custom_call.1} parent=1 // pred_fallthru
      _
    // Predicated region
    $region18: #{tpu_custom_call.1} parent=1 // pred_check
      _
    $region19: #{tpu_custom_call.1} parent=1 // pred_check_branch
      %40 = sbr.rel (0) target = $region21
    $region20: #{tpu_custom_call.1} parent=1 // pred_region
      _
    $region21: #{tpu_custom_call.1} parent=1 // pred_fallthru
      _
    // Predicated region
    $region22: #{tpu_custom_call.1} parent=1 // pred_check
      _
    $region23: #{tpu_custom_call.1} parent=1 // pred_check_branch
      %42 = sbr.rel (0) target = $region25
    $region24: #{tpu_custom_call.1} parent=1 // pred_region
      _
    $region25: #{tpu_custom_call.1} parent=1 // pred_fallthru
      _
    // Predicated region
    $region26: #{tpu_custom_call.1} parent=1 // pred_check
      _
    $region27: #{tpu_custom_call.1} parent=1 // pred_check_branch
      %44 = sbr.rel (0) target = $region29
    $region28: #{tpu_custom_call.1} parent=1 // pred_region
      _
    $region29: #{tpu_custom_call.1} parent=1 // pred_fallthru
      _
    // Predicated region
    $region30: #{tpu_custom_call.1} parent=1 // pred_check
      _
    $region31: #{tpu_custom_call.1} parent=1 // pred_check_branch
      %46 = sbr.rel (0) target = $region33
    $region32: #{tpu_custom_call.1} parent=1 // pred_region
      %s48 = ssub.s32 512, 512
      %49 = vsyncadd [#allocation6], %s48
      %s50 = sshll.u32 [#allocation5], 4
      %s51 = int_to_ptr.vmem [resolvable:$true] %s50
      %56 = dma.hbm_to_vmem [thread:$0]  %s7, 512, %s51, [#allocation6], 128, 128, 8
    $region33: #{tpu_custom_call.1} parent=1 // pred_fallthru
      _
    // Predicated region
    $region34: #{tpu_custom_call.1} parent=1 // pred_check
      _
    $region35: #{tpu_custom_call.1} parent=1 // pred_check_branch
      %58 = sbr.rel (0) target = $region37
    $region36: #{tpu_custom_call.1} parent=1 // pred_region
      _
    $region37: #{tpu_custom_call.1} parent=1 // pred_fallthru
      _
    // Predicated region
    $region38: #{tpu_custom_call.1} parent=1 // pred_check
      _
    $region39: #{tpu_custom_call.1} parent=1 // pred_check_branch
      %60 = sbr.rel (0) target = $region41
    $region40: #{tpu_custom_call.1} parent=1 // pred_region
      _
    $region41: #{tpu_custom_call.1} parent=1 // pred_fallthru
      _
    // Predicated region
    $region42: #{tpu_custom_call.1} parent=1 // pred_check
      _
    $region43: #{tpu_custom_call.1} parent=1 // pred_check_branch
      %62 = sbr.rel (0) target = $region45
    $region44: #{tpu_custom_call.1} parent=1 // pred_region
      %63 = dma.done [#allocation3], 256
    $region45: #{tpu_custom_call.1} parent=1 // pred_fallthru
      _
    // Predicated region
    $region46: #{tpu_custom_call.1} parent=1 // pred_check
      _
    $region47: #{tpu_custom_call.1} parent=1 // pred_check_branch
      %65 = sbr.rel (0) target = $region49
    $region48: #{tpu_custom_call.1} parent=1 // pred_region
      %66 = dma.done [#allocation6], 512
    $region49: #{tpu_custom_call.1} parent=1 // pred_fallthru
      _
    %v67 = vld [vmem:[%s0] sm:$0xff]
    %v68 = vld [vmem:[%s0 + $0x8] sm:$0xff]
    %v69 = vld [vmem:[%s0 + $0x10] sm:$0xff]
    %v70 = vld [vmem:[%s0 + $0x18] sm:$0xff]
    %v71 = vld [vmem:[%s2] sm:$0xff]
    %v72 = vld [vmem:[%s2 + $0x8] sm:$0xff]
    %v73 = vld [vmem:[%s4] sm:$0x1]
    %v75 = vlaneseq
    %v76 = vshrl.u32 %v75, 7
    %v77 = vsub.s32 0, %v76
    %v78 = vrot.slane %v73, %v77
    %vm80 = vcmask 130048
    %v82 = vsel %vm80, %v67, 0
    %v85 = vsel %vm80, %v68, 0
    %v88 = vsel %vm80, %v69, 0
    %v91 = vsel %vm80, %v70, 0
    %93 = vmatprep.subr.mxu0 0.0
    %94 = vmatpush1.msra.mxu0 0.0
    %95 = vmatprep.subr.mxu0 0.0
    %96 = vmatpush1.msra.mxu0 0.0
    %97 = vmatprep.subr.mxu0 0.0
    %98 = vmatpush1.msra.mxu0 0.0
    %99 = vmatprep.subr.mxu0 0.0
    %100 = vmatpush1.msra.mxu0 0.0
    %101 = vmatprep.subr.mxu0 0.0
    %102 = vmatpush1.msra.mxu0 0.0
    %103 = vmatprep.subr.mxu0 0.0
    %104 = vmatpush1.msra.mxu0 0.0
    %105 = vmatprep.subr.mxu0 0.0
    %106 = vmatpush1.msra.mxu0 0.0
    %107 = vmatprep.subr.mxu0 0.0
    %108 = vmatpush1.msra.mxu0 0.0
    %109 = vmatprep.subr.mxu0 0.0
    %110 = vmatpush1.msra.mxu0 0.0
    %111 = vmatprep.subr.mxu0 0.0
    %112 = vmatpush1.msra.mxu0 0.0
    %113 = vmatprep.subr.mxu0 0.0
    %114 = vmatpush1.msra.mxu0 0.0
    %115 = vmatprep.subr.mxu0 0.0
    %116 = vmatpush1.msra.mxu0 0.0
    %117 = vmatprep.subr.mxu0 0.0
    %118 = vmatpush1.msra.mxu0 0.0
    %119 = vmatprep.subr.mxu0 0.0
    %120 = vmatpush1.msra.mxu0 0.0
    %121 = vmatprep.subr.mxu0 0.0
    %122 = vmatpush1.msra.mxu0 %v72
    %123 = vmatprep.subr.mxu0 0.0
    %124 = vmatpush1.msra.mxu0 %v71
    %125 = vmatprep.subr.mxu0 0.0
    %126 = vmatpush2.msra.mxu0 0.0
    %127 = vmatprep.subr.mxu0 0.0
    %128 = vmatpush2.msra.mxu0 0.0
    %129 = vmatprep.subr.mxu0 0.0
    %130 = vmatpush2.msra.mxu0 0.0
    %131 = vmatprep.subr.mxu0 0.0
    %132 = vmatpush2.msra.mxu0 0.0
    %133 = vmatprep.subr.mxu0 0.0
    %134 = vmatpush2.msra.mxu0 0.0
    %135 = vmatprep.subr.mxu0 0.0
    %136 = vmatpush2.msra.mxu0 0.0
    %137 = vmatprep.subr.mxu0 0.0
    %138 = vmatpush2.msra.mxu0 0.0
    %139 = vmatprep.subr.mxu0 0.0
    %140 = vmatpush2.msra.mxu0 0.0
    %141 = vmatprep.subr.mxu0 0.0
    %142 = vmatpush2.msra.mxu0 0.0
    %143 = vmatprep.subr.mxu0 0.0
    %144 = vmatpush2.msra.mxu0 0.0
    %145 = vmatprep.subr.mxu0 0.0
    %146 = vmatpush2.msra.mxu0 0.0
    %147 = vmatprep.subr.mxu0 0.0
    %148 = vmatpush2.msra.mxu0 0.0
    %149 = vmatprep.subr.mxu0 0.0
    %150 = vmatpush2.msra.mxu0 0.0
    %151 = vmatprep.subr.mxu0 0.0
    %152 = vmatpush2.msra.mxu0 0.0
    %153 = vmatprep.subr.mxu0 0.0
    %154 = vmatpush2.msra.mxu0 0.0
    %155 = vmatprep.subr.mxu0 0.0
    %156 = vmatpush2.msra.mxu0 0.0
    %157 = vmatprep.mubr.f32.mxu0 0.0
    %158 = vmatmul.mubr.f32.gmra.mxu0 %v82
    %v159 = vpop.f32.mrf.mxu0
    %v160 = vadd.f32 %v78, %v159
    %v161 = vpop.f32.mrf.mxu0
    %162 = vmatprep.mubr.f32.mxu0 0.0
    %163 = vmatmul.mubr.f32.gmra.mxu0 %v85
    %v164 = vpop.f32.mrf.mxu0
    %v165 = vadd.f32 %v78, %v164
    %v166 = vpop.f32.mrf.mxu0
    %167 = vmatprep.mubr.f32.mxu0 0.0
    %168 = vmatmul.mubr.f32.gmra.mxu0 %v88
    %v169 = vpop.f32.mrf.mxu0
    %v170 = vadd.f32 %v78, %v169
    %v171 = vpop.f32.mrf.mxu0
    %172 = vmatprep.mubr.f32.mxu0 0.0
    %173 = vmatmul.mubr.f32.gmra.mxu0 %v91
    %v174 = vpop.f32.mrf.mxu0
    %v175 = vadd.f32 %v78, %v174
    %v176 = vpop.f32.mrf.mxu0
    %177 = vdwg.mxu0
    %v178 = vld [vmem:[#allocation2] sm:$0xff]
    %v179 = vld [vmem:[#allocation2 + $0x8] sm:$0xff]
    %v180 = vld [vmem:[%s5] sm:$0x1]
    %v182 = vlaneseq
    %v183 = vshrl.u32 %v182, 7
    %v184 = vsub.s32 0, %v183
    %v185 = vrot.slane %v180, %v184
    %187 = vmatprep.subr.mxu0 0.0
    %188 = vmatpush1.msra.mxu0 0.0
    %189 = vmatprep.subr.mxu0 0.0
    %190 = vmatpush1.msra.mxu0 0.0
    %191 = vmatprep.subr.mxu0 0.0
    %192 = vmatpush1.msra.mxu0 0.0
    %193 = vmatprep.subr.mxu0 0.0
    %194 = vmatpush1.msra.mxu0 0.0
    %195 = vmatprep.subr.mxu0 0.0
    %196 = vmatpush1.msra.mxu0 0.0
    %197 = vmatprep.subr.mxu0 0.0
    %198 = vmatpush1.msra.mxu0 0.0
    %199 = vmatprep.subr.mxu0 0.0
    %200 = vmatpush1.msra.mxu0 0.0
    %201 = vmatprep.subr.mxu0 0.0
    %202 = vmatpush1.msra.mxu0 0.0
    %203 = vmatprep.subr.mxu0 0.0
    %204 = vmatpush1.msra.mxu0 0.0
    %205 = vmatprep.subr.mxu0 0.0
    %206 = vmatpush1.msra.mxu0 0.0
    %207 = vmatprep.subr.mxu0 0.0
    %208 = vmatpush1.msra.mxu0 0.0
    %209 = vmatprep.subr.mxu0 0.0
    %210 = vmatpush1.msra.mxu0 0.0
    %211 = vmatprep.subr.mxu0 0.0
    %212 = vmatpush1.msra.mxu0 0.0
    %213 = vmatprep.subr.mxu0 0.0
    %214 = vmatpush1.msra.mxu0 0.0
    %215 = vmatprep.subr.mxu0 0.0
    %216 = vmatpush1.msra.mxu0 %v179
    %217 = vmatprep.subr.mxu0 0.0
    %218 = vmatpush1.msra.mxu0 %v178
    %219 = vmatprep.subr.mxu0 0.0
    %220 = vmatpush2.msra.mxu0 0.0
    %221 = vmatprep.subr.mxu0 0.0
    %222 = vmatpush2.msra.mxu0 0.0
    %223 = vmatprep.subr.mxu0 0.0
    %224 = vmatpush2.msra.mxu0 0.0
    %225 = vmatprep.subr.mxu0 0.0
    %226 = vmatpush2.msra.mxu0 0.0
    %227 = vmatprep.subr.mxu0 0.0
    %228 = vmatpush2.msra.mxu0 0.0
    %229 = vmatprep.subr.mxu0 0.0
    %230 = vmatpush2.msra.mxu0 0.0
    %231 = vmatprep.subr.mxu0 0.0
    %232 = vmatpush2.msra.mxu0 0.0
    %233 = vmatprep.subr.mxu0 0.0
    %234 = vmatpush2.msra.mxu0 0.0
    %235 = vmatprep.subr.mxu0 0.0
    %236 = vmatpush2.msra.mxu0 0.0
    %237 = vmatprep.subr.mxu0 0.0
    %238 = vmatpush2.msra.mxu0 0.0
    %239 = vmatprep.subr.mxu0 0.0
    %240 = vmatpush2.msra.mxu0 0.0
    %241 = vmatprep.subr.mxu0 0.0
    %242 = vmatpush2.msra.mxu0 0.0
    %243 = vmatprep.subr.mxu0 0.0
    %244 = vmatpush2.msra.mxu0 0.0
    %245 = vmatprep.subr.mxu0 0.0
    %246 = vmatpush2.msra.mxu0 0.0
    %247 = vmatprep.subr.mxu0 0.0
    %248 = vmatpush2.msra.mxu0 0.0
    %249 = vmatprep.subr.mxu0 0.0
    %250 = vmatpush2.msra.mxu0 0.0
    %251 = vmatprep.mubr.f32.mxu0 0.0
    %252 = vmatmul.mubr.f32.gmra.mxu0 %v82
    %v253 = vpop.f32.mrf.mxu0
    %v254 = vadd.f32 %v185, %v253
    %v255 = vpop.f32.mrf.mxu0
    %256 = vmatprep.mubr.f32.mxu0 0.0
    %257 = vmatmul.mubr.f32.gmra.mxu0 %v85
    %v258 = vpop.f32.mrf.mxu0
    %v259 = vadd.f32 %v185, %v258
    %v260 = vpop.f32.mrf.mxu0
    %261 = vmatprep.mubr.f32.mxu0 0.0
    %262 = vmatmul.mubr.f32.gmra.mxu0 %v88
    %v263 = vpop.f32.mrf.mxu0
    %v264 = vadd.f32 %v185, %v263
    %v265 = vpop.f32.mrf.mxu0
    %266 = vmatprep.mubr.f32.mxu0 0.0
    %267 = vmatmul.mubr.f32.gmra.mxu0 %v91
    %v268 = vpop.f32.mrf.mxu0
    %v269 = vadd.f32 %v185, %v268
    %v270 = vpop.f32.mrf.mxu0
    %271 = vdwg.mxu0
    %v272 = vld [vmem:[%s6] sm:$0xff]
    %v273 = vld [vmem:[%s6 + $0x8] sm:$0xff]
    %v274 = vld [vmem:[%s6 + $0x10] sm:$0xff]
    %v275 = vld [vmem:[%s6 + $0x18] sm:$0xff]
    %v276 = vld [vmem:[#allocation5] sm:$0xff]
    %v277 = vld [vmem:[#allocation5 + $0x8] sm:$0xff]
    %v278 = vld [vmem:[#allocation5 + $0x10] sm:$0xff]
    %v279 = vld [vmem:[#allocation5 + $0x18] sm:$0xff]
    %v280 = vld [vmem:[%s8] sm:$0x1]
    %v282 = vlaneseq
    %v283 = vshrl.u32 %v282, 7
    %v284 = vsub.s32 0, %v283
    %v285 = vrot.slane %v280, %v284
    %v286 = vld [vmem:[%s9] sm:$0x1]
    %v288 = vlaneseq
    %v289 = vshrl.u32 %v288, 7
    %v290 = vsub.s32 0, %v289
    %v291 = vrot.slane %v286, %v290
    %v292 = vld [vmem:[%s1] sm:$0xf]
    %s293 = scalar_lea.vmem %s1, 4
    %v294 = vld [vmem:[%s293] sm:$0xf]
    %vm295 = vcmask 261120
    %v297 = vsel %vm295, %v292, 0
    %299 = vmatprep.subr.mxu0 0.0
    %300 = vmatpush1.msra.mxu0 0.0
    %301 = vmatprep.subr.mxu0 0.0
    %302 = vmatpush1.msra.mxu0 0.0
    %303 = vmatprep.subr.mxu0 0.0
    %304 = vmatpush1.msra.mxu0 0.0
    %305 = vmatprep.subr.mxu0 0.0
    %306 = vmatpush1.msra.mxu0 0.0
    %307 = vmatprep.subr.mxu0 0.0
    %308 = vmatpush1.msra.mxu0 0.0
    %309 = vmatprep.subr.mxu0 0.0
    %310 = vmatpush1.msra.mxu0 0.0
    %311 = vmatprep.subr.mxu0 0.0
    %312 = vmatpush1.msra.mxu0 0.0
    %313 = vmatprep.subr.mxu0 0.0
    %314 = vmatpush1.msra.mxu0 0.0
    %315 = vmatprep.subr.mxu0 0.0
    %316 = vmatpush1.msra.mxu0 0.0
    %317 = vmatprep.subr.mxu0 0.0
    %318 = vmatpush1.msra.mxu0 0.0
    %319 = vmatprep.subr.mxu0 0.0
    %320 = vmatpush1.msra.mxu0 0.0
    %321 = vmatprep.subr.mxu0 0.0
    %322 = vmatpush1.msra.mxu0 0.0
    %323 = vmatprep.subr.mxu0 0.0
    %324 = vmatpush1.msra.mxu0 %v275
    %325 = vmatprep.subr.mxu0 0.0
    %326 = vmatpush1.msra.mxu0 %v274
    %327 = vmatprep.subr.mxu0 0.0
    %328 = vmatpush1.msra.mxu0 %v273
    %329 = vmatprep.subr.mxu0 0.0
    %330 = vmatpush1.msra.mxu0 %v272
    %331 = vmatprep.subr.mxu0 0.0
    %332 = vmatpush2.msra.mxu0 0.0
    %333 = vmatprep.subr.mxu0 0.0
    %334 = vmatpush2.msra.mxu0 0.0
    %335 = vmatprep.subr.mxu0 0.0
    %336 = vmatpush2.msra.mxu0 0.0
    %337 = vmatprep.subr.mxu0 0.0
    %338 = vmatpush2.msra.mxu0 0.0
    %339 = vmatprep.subr.mxu0 0.0
    %340 = vmatpush2.msra.mxu0 0.0
    %341 = vmatprep.subr.mxu0 0.0
    %342 = vmatpush2.msra.mxu0 0.0
    %343 = vmatprep.subr.mxu0 0.0
    %344 = vmatpush2.msra.mxu0 0.0
    %345 = vmatprep.subr.mxu0 0.0
    %346 = vmatpush2.msra.mxu0 0.0
    %347 = vmatprep.subr.mxu0 0.0
    %348 = vmatpush2.msra.mxu0 0.0
    %349 = vmatprep.subr.mxu0 0.0
    %350 = vmatpush2.msra.mxu0 0.0
    %351 = vmatprep.subr.mxu0 0.0
    %352 = vmatpush2.msra.mxu0 0.0
    %353 = vmatprep.subr.mxu0 0.0
    %354 = vmatpush2.msra.mxu0 0.0
    %355 = vmatprep.subr.mxu0 0.0
    %356 = vmatpush2.msra.mxu0 0.0
    %357 = vmatprep.subr.mxu0 0.0
    %358 = vmatpush2.msra.mxu0 0.0
    %359 = vmatprep.subr.mxu0 0.0
    %360 = vmatpush2.msra.mxu0 0.0
    %361 = vmatprep.subr.mxu0 0.0
    %362 = vmatpush2.msra.mxu0 0.0
    %363 = vmatprep.mubr.f32.mxu0 0.0
    %364 = vmatmul.mubr.f32.gmra.mxu0 %v297
    %v365 = vpop.f32.mrf.mxu0
    %v366 = vadd.f32 0.0, %v365
    %v367 = vpop.f32.mrf.mxu0
    %368 = vdwg.mxu0
    %v370 = vsel %vm295, %v294, 0
    %372 = vmatprep.subr.mxu0 0.0
    %373 = vmatpush1.msra.mxu0 0.0
    %374 = vmatprep.subr.mxu0 0.0
    %375 = vmatpush1.msra.mxu0 0.0
    %376 = vmatprep.subr.mxu0 0.0
    %377 = vmatpush1.msra.mxu0 0.0
    %378 = vmatprep.subr.mxu0 0.0
    %379 = vmatpush1.msra.mxu0 0.0
    %380 = vmatprep.subr.mxu0 0.0
    %381 = vmatpush1.msra.mxu0 0.0
    %382 = vmatprep.subr.mxu0 0.0
    %383 = vmatpush1.msra.mxu0 0.0
    %384 = vmatprep.subr.mxu0 0.0
    %385 = vmatpush1.msra.mxu0 0.0
    %386 = vmatprep.subr.mxu0 0.0
    %387 = vmatpush1.msra.mxu0 0.0
    %388 = vmatprep.subr.mxu0 0.0
    %389 = vmatpush1.msra.mxu0 0.0
    %390 = vmatprep.subr.mxu0 0.0
    %391 = vmatpush1.msra.mxu0 0.0
    %392 = vmatprep.subr.mxu0 0.0
    %393 = vmatpush1.msra.mxu0 0.0
    %394 = vmatprep.subr.mxu0 0.0
    %395 = vmatpush1.msra.mxu0 0.0
    %396 = vmatprep.subr.mxu0 0.0
    %397 = vmatpush1.msra.mxu0 %v279
    %398 = vmatprep.subr.mxu0 0.0
    %399 = vmatpush1.msra.mxu0 %v278
    %400 = vmatprep.subr.mxu0 0.0
    %401 = vmatpush1.msra.mxu0 %v277
    %402 = vmatprep.subr.mxu0 0.0
    %403 = vmatpush1.msra.mxu0 %v276
    %404 = vmatprep.subr.mxu0 0.0
    %405 = vmatpush2.msra.mxu0 0.0
    %406 = vmatprep.subr.mxu0 0.0
    %407 = vmatpush2.msra.mxu0 0.0
    %408 = vmatprep.subr.mxu0 0.0
    %409 = vmatpush2.msra.mxu0 0.0
    %410 = vmatprep.subr.mxu0 0.0
    %411 = vmatpush2.msra.mxu0 0.0
    %412 = vmatprep.subr.mxu0 0.0
    %413 = vmatpush2.msra.mxu0 0.0
    %414 = vmatprep.subr.mxu0 0.0
    %415 = vmatpush2.msra.mxu0 0.0
    %416 = vmatprep.subr.mxu0 0.0
    %417 = vmatpush2.msra.mxu0 0.0
    %418 = vmatprep.subr.mxu0 0.0
    %419 = vmatpush2.msra.mxu0 0.0
    %420 = vmatprep.subr.mxu0 0.0
    %421 = vmatpush2.msra.mxu0 0.0
    %422 = vmatprep.subr.mxu0 0.0
    %423 = vmatpush2.msra.mxu0 0.0
    %424 = vmatprep.subr.mxu0 0.0
    %425 = vmatpush2.msra.mxu0 0.0
    %426 = vmatprep.subr.mxu0 0.0
    %427 = vmatpush2.msra.mxu0 0.0
    %428 = vmatprep.subr.mxu0 0.0
    %429 = vmatpush2.msra.mxu0 0.0
    %430 = vmatprep.subr.mxu0 0.0
    %431 = vmatpush2.msra.mxu0 0.0
    %432 = vmatprep.subr.mxu0 0.0
    %433 = vmatpush2.msra.mxu0 0.0
    %434 = vmatprep.subr.mxu0 0.0
    %435 = vmatpush2.msra.mxu0 0.0
    %436 = vmatprep.mubr.f32.mxu0 0.0
    %437 = vmatmul.mubr.f32.gmra.mxu0 %v370
    %v438 = vpop.f32.mrf.mxu0
    %v439 = vadd.f32 0.0, %v438
    %v440 = vpop.f32.mrf.mxu0
    %441 = vdwg.mxu0
    %v442 = vadd.f32 %v160, %v366
    %v443 = vxor.u32 %v442, 2147483648
    %v444 = vmul.f32 %v443, 1.442695
    %v445 = vpow.pop %v444
    %v446 = vadd.f32 %v445, 1.0
    %v447 = vrcp.pop %v446
    %v448 = vmul.f32 1.0, %v447
    %449 = vrot.lane.b32.xlu0 %v285, 64
    %v450 = vpop.permute.xlu0 %449
    %v452 = vadd.f32 %v366, %v450
    %454 = vrot.lane.b32.xlu0 %v452, 64
    %v455 = vpop.permute.xlu0 %454
    %v457 = vmul.f32 %v448, %v455
    %459 = vrot.lane.b32.xlu0 %v457, 64
    %v460 = vpop.permute.xlu0 %459
    %v462 = vadd.f32 %v160, %v460
    %v463 = vtanh.pop %v462
    %465 = vrot.lane.b32.xlu0 %v463, 64
    %v466 = vpop.permute.xlu0 %465
    %v468 = vsub.f32 %v292, %v466
    %470 = vrot.lane.b32.xlu0 %v468, 32
    %v471 = vpop.permute.xlu0 %470
    %v473 = vmul.f32 %v448, %v471
    %475 = vrot.lane.b32.xlu0 %v473, 32
    %v476 = vpop.permute.xlu0 %475
    %v478 = vadd.f32 %v463, %v476
    %v480 = vrot.slane %v439, 4
    %v482 = vadd.f32 %v269, %v480
    %v483 = vxor.u32 %v482, 2147483648
    %v484 = vmul.f32 %v483, 1.442695
    %v485 = vpow.pop %v484
    %v486 = vadd.f32 %v485, 1.0
    %v487 = vrcp.pop %v486
    %v488 = vmul.f32 1.0, %v487
    %489 = vrot.lane.b32.xlu0 %v291, 64
    %v490 = vpop.permute.xlu0 %489
    %v492 = vadd.f32 %v439, %v490
    %v494 = vrot.slane %v492, 4
    %495 = vrot.lane.b32.xlu0 %v494, 64
    %v496 = vpop.permute.xlu0 %495
    %v498 = vmul.f32 %v488, %v496
    %500 = vrot.lane.b32.xlu0 %v498, 64
    %v501 = vpop.permute.xlu0 %500
    %v503 = vadd.f32 %v269, %v501
    %v504 = vtanh.pop %v503
    %v506 = vrot.slane %v504, 4
    %507 = vrot.lane.b32.xlu0 %v506, 64
    %v508 = vpop.permute.xlu0 %507
    %v510 = vsub.f32 %v294, %v508
    %v512 = vrot.slane %v510, 4
    %513 = vrot.lane.b32.xlu0 %v512, 32
    %v514 = vpop.permute.xlu0 %513
    %v516 = vmul.f32 %v488, %v514
    %518 = vrot.lane.b32.xlu0 %v516, 32
    %v519 = vpop.permute.xlu0 %518
    %v521 = vadd.f32 %v504, %v519
    %523 = vrot.lane.b32.xlu0 %v478, 64
    %v524 = vpop.permute.xlu0 %523
    %vm526 = vcmask 257024
    %527 = vst.msk [vmem:[#allocation7] sm:$0xf] %vm526, %v524
    %529 = vrot.lane.b32.xlu0 %v521, 96
    %v530 = vpop.permute.xlu0 %529
    %vm532 = vcmask 523524
    %533 = vst.msk [vmem:[#allocation7 + $0x18] sm:$0xf0] %vm532, %v530
    %v534 = vsel %vm295, %v524, 0
    %536 = vmatprep.subr.mxu0 0.0
    %537 = vmatpush1.msra.mxu0 0.0
    %538 = vmatprep.subr.mxu0 0.0
    %539 = vmatpush1.msra.mxu0 0.0
    %540 = vmatprep.subr.mxu0 0.0
    %541 = vmatpush1.msra.mxu0 0.0
    %542 = vmatprep.subr.mxu0 0.0
    %543 = vmatpush1.msra.mxu0 0.0
    %544 = vmatprep.subr.mxu0 0.0
    %545 = vmatpush1.msra.mxu0 0.0
    %546 = vmatprep.subr.mxu0 0.0
    %547 = vmatpush1.msra.mxu0 0.0
    %548 = vmatprep.subr.mxu0 0.0
    %549 = vmatpush1.msra.mxu0 0.0
    %550 = vmatprep.subr.mxu0 0.0
    %551 = vmatpush1.msra.mxu0 0.0
    %552 = vmatprep.subr.mxu0 0.0
    %553 = vmatpush1.msra.mxu0 0.0
    %554 = vmatprep.subr.mxu0 0.0
    %555 = vmatpush1.msra.mxu0 0.0
    %556 = vmatprep.subr.mxu0 0.0
    %557 = vmatpush1.msra.mxu0 0.0
    %558 = vmatprep.subr.mxu0 0.0
    %559 = vmatpush1.msra.mxu0 0.0
    %560 = vmatprep.subr.mxu0 0.0
    %561 = vmatpush1.msra.mxu0 %v275
    %562 = vmatprep.subr.mxu0 0.0
    %563 = vmatpush1.msra.mxu0 %v274
    %564 = vmatprep.subr.mxu0 0.0
    %565 = vmatpush1.msra.mxu0 %v273
    %566 = vmatprep.subr.mxu0 0.0
    %567 = vmatpush1.msra.mxu0 %v272
    %568 = vmatprep.subr.mxu0 0.0
    %569 = vmatpush2.msra.mxu0 0.0
    %570 = vmatprep.subr.mxu0 0.0
    %571 = vmatpush2.msra.mxu0 0.0
    %572 = vmatprep.subr.mxu0 0.0
    %573 = vmatpush2.msra.mxu0 0.0
    %574 = vmatprep.subr.mxu0 0.0
    %575 = vmatpush2.msra.mxu0 0.0
    %576 = vmatprep.subr.mxu0 0.0
    %577 = vmatpush2.msra.mxu0 0.0
    %578 = vmatprep.subr.mxu0 0.0
    %579 = vmatpush2.msra.mxu0 0.0
    %580 = vmatprep.subr.mxu0 0.0
    %581 = vmatpush2.msra.mxu0 0.0
    %582 = vmatprep.subr.mxu0 0.0
    %583 = vmatpush2.msra.mxu0 0.0
    %584 = vmatprep.subr.mxu0 0.0
    %585 = vmatpush2.msra.mxu0 0.0
    %586 = vmatprep.subr.mxu0 0.0
    %587 = vmatpush2.msra.mxu0 0.0
    %588 = vmatprep.subr.mxu0 0.0
    %589 = vmatpush2.msra.mxu0 0.0
    %590 = vmatprep.subr.mxu0 0.0
    %591 = vmatpush2.msra.mxu0 0.0
    %592 = vmatprep.subr.mxu0 0.0
    %593 = vmatpush2.msra.mxu0 0.0
    %594 = vmatprep.subr.mxu0 0.0
    %595 = vmatpush2.msra.mxu0 0.0
    %596 = vmatprep.subr.mxu0 0.0
    %597 = vmatpush2.msra.mxu0 0.0
    %598 = vmatprep.subr.mxu0 0.0
    %599 = vmatpush2.msra.mxu0 0.0
    %600 = vmatprep.mubr.f32.mxu0 0.0
    %601 = vmatmul.mubr.f32.gmra.mxu0 %v534
    %v602 = vpop.f32.mrf.mxu0
    %v603 = vadd.f32 0.0, %v602
    %v604 = vpop.f32.mrf.mxu0
    %605 = vdwg.mxu0
    %v606 = vrot.slane %v521, 4
    %607 = vrot.lane.b32.xlu0 %v606, 64
    %v608 = vpop.permute.xlu0 %607
    %v609 = vsel %vm295, %v608, 0
    %611 = vmatprep.subr.mxu0 0.0
    %612 = vmatpush1.msra.mxu0 0.0
    %613 = vmatprep.subr.mxu0 0.0
    %614 = vmatpush1.msra.mxu0 0.0
    %615 = vmatprep.subr.mxu0 0.0
    %616 = vmatpush1.msra.mxu0 0.0
    %617 = vmatprep.subr.mxu0 0.0
    %618 = vmatpush1.msra.mxu0 0.0
    %619 = vmatprep.subr.mxu0 0.0
    %620 = vmatpush1.msra.mxu0 0.0
    %621 = vmatprep.subr.mxu0 0.0
    %622 = vmatpush1.msra.mxu0 0.0
    %623 = vmatprep.subr.mxu0 0.0
    %624 = vmatpush1.msra.mxu0 0.0
    %625 = vmatprep.subr.mxu0 0.0
    %626 = vmatpush1.msra.mxu0 0.0
    %627 = vmatprep.subr.mxu0 0.0
    %628 = vmatpush1.msra.mxu0 0.0
    %629 = vmatprep.subr.mxu0 0.0
    %630 = vmatpush1.msra.mxu0 0.0
    %631 = vmatprep.subr.mxu0 0.0
    %632 = vmatpush1.msra.mxu0 0.0
    %633 = vmatprep.subr.mxu0 0.0
    %634 = vmatpush1.msra.mxu0 0.0
    %635 = vmatprep.subr.mxu0 0.0
    %636 = vmatpush1.msra.mxu0 %v279
    %637 = vmatprep.subr.mxu0 0.0
    %638 = vmatpush1.msra.mxu0 %v278
    %639 = vmatprep.subr.mxu0 0.0
    %640 = vmatpush1.msra.mxu0 %v277
    %641 = vmatprep.subr.mxu0 0.0
    %642 = vmatpush1.msra.mxu0 %v276
    %643 = vmatprep.subr.mxu0 0.0
    %644 = vmatpush2.msra.mxu0 0.0
    %645 = vmatprep.subr.mxu0 0.0
    %646 = vmatpush2.msra.mxu0 0.0
    %647 = vmatprep.subr.mxu0 0.0
    %648 = vmatpush2.msra.mxu0 0.0
    %649 = vmatprep.subr.mxu0 0.0
    %650 = vmatpush2.msra.mxu0 0.0
    %651 = vmatprep.subr.mxu0 0.0
    %652 = vmatpush2.msra.mxu0 0.0
    %653 = vmatprep.subr.mxu0 0.0
    %654 = vmatpush2.msra.mxu0 0.0
    %655 = vmatprep.subr.mxu0 0.0
    %656 = vmatpush2.msra.mxu0 0.0
    %657 = vmatprep.subr.mxu0 0.0
    %658 = vmatpush2.msra.mxu0 0.0
    %659 = vmatprep.subr.mxu0 0.0
    %660 = vmatpush2.msra.mxu0 0.0
    %661 = vmatprep.subr.mxu0 0.0
    %662 = vmatpush2.msra.mxu0 0.0
    %663 = vmatprep.subr.mxu0 0.0
    %664 = vmatpush2.msra.mxu0 0.0
    %665 = vmatprep.subr.mxu0 0.0
    %666 = vmatpush2.msra.mxu0 0.0
    %667 = vmatprep.subr.mxu0 0.0
    %668 = vmatpush2.msra.mxu0 0.0
    %669 = vmatprep.subr.mxu0 0.0
    %670 = vmatpush2.msra.mxu0 0.0
    %671 = vmatprep.subr.mxu0 0.0
    %672 = vmatpush2.msra.mxu0 0.0
    %673 = vmatprep.subr.mxu0 0.0
    %674 = vmatpush2.msra.mxu0 0.0
    %675 = vmatprep.mubr.f32.mxu0 0.0
    %676 = vmatmul.mubr.f32.gmra.mxu0 %v609
    %v677 = vpop.f32.mrf.mxu0
    %v678 = vadd.f32 0.0, %v677
    %v679 = vpop.f32.mrf.mxu0
    %680 = vdwg.mxu0
    %v682 = vrot.slane %v603, 4
    %v684 = vadd.f32 %v160, %v682
    %v685 = vxor.u32 %v684, 2147483648
    %v686 = vmul.f32 %v685, 1.442695
    %v687 = vpow.pop %v686
    %v688 = vadd.f32 %v687, 1.0
    %v689 = vrcp.pop %v688
    %v690 = vmul.f32 1.0, %v689
    %v691 = vadd.f32 %v603, %v450
    %v693 = vrot.slane %v691, 4
    %694 = vrot.lane.b32.xlu0 %v693, 64
    %v695 = vpop.permute.xlu0 %694
    %v697 = vmul.f32 %v690, %v695
    %699 = vrot.lane.b32.xlu0 %v697, 64
    %v700 = vpop.permute.xlu0 %699
    %v702 = vadd.f32 %v160, %v700
    %v703 = vtanh.pop %v702
    %v705 = vrot.slane %v703, 4
    %v707 = vsub.f32 %v478, %v705
    %v709 = vrot.slane %v707, 4
    %710 = vrot.lane.b32.xlu0 %v709, 96
    %v711 = vpop.permute.xlu0 %710
    %v713 = vmul.f32 %v690, %v711
    %715 = vrot.lane.b32.xlu0 %v713, 32
    %v716 = vpop.permute.xlu0 %715
    %v718 = vadd.f32 %v703, %v716
    %v719 = vadd.f32 %v269, %v678
    %v720 = vxor.u32 %v719, 2147483648
    %v721 = vmul.f32 %v720, 1.442695
    %v722 = vpow.pop %v721
    %v723 = vadd.f32 %v722, 1.0
    %v724 = vrcp.pop %v723
    %v725 = vmul.f32 1.0, %v724
    %v726 = vadd.f32 %v678, %v490
    %728 = vrot.lane.b32.xlu0 %v726, 64
    %v729 = vpop.permute.xlu0 %728
    %v731 = vmul.f32 %v725, %v729
    %733 = vrot.lane.b32.xlu0 %v731, 64
    %v734 = vpop.permute.xlu0 %733
    %v736 = vadd.f32 %v269, %v734
    %v737 = vtanh.pop %v736
    %v739 = vrot.slane %v737, 4
    %v741 = vsub.f32 %v521, %v739
    %v743 = vrot.slane %v741, 4
    %744 = vrot.lane.b32.xlu0 %v743, 96
    %v745 = vpop.permute.xlu0 %744
    %v747 = vmul.f32 %v725, %v745
    %749 = vrot.lane.b32.xlu0 %v747, 32
    %v750 = vpop.permute.xlu0 %749
    %v752 = vadd.f32 %v737, %v750
    %754 = vrot.lane.b32.xlu0 %v718, 64
    %v755 = vpop.permute.xlu0 %754
    %vm757 = vcmask 261124
    %758 = vst.msk [vmem:[#allocation7] sm:$0xf0] %vm757, %v755
    %760 = vrot.lane.b32.xlu0 %v752, 96
    %v761 = vpop.permute.xlu0 %760
    %vm763 = vcmask 519424
    %764 = vst.msk [vmem:[#allocation7 + $0x18] sm:$0xf] %vm763, %v761
    %v765 = vrot.slane %v718, 4
    %766 = vrot.lane.b32.xlu0 %v765, 64
    %v767 = vpop.permute.xlu0 %766
    %v768 = vsel %vm295, %v767, 0
    %770 = vmatprep.subr.mxu0 0.0
    %771 = vmatpush1.msra.mxu0 0.0
    %772 = vmatprep.subr.mxu0 0.0
    %773 = vmatpush1.msra.mxu0 0.0
    %774 = vmatprep.subr.mxu0 0.0
    %775 = vmatpush1.msra.mxu0 0.0
    %776 = vmatprep.subr.mxu0 0.0
    %777 = vmatpush1.msra.mxu0 0.0
    %778 = vmatprep.subr.mxu0 0.0
    %779 = vmatpush1.msra.mxu0 0.0
    %780 = vmatprep.subr.mxu0 0.0
    %781 = vmatpush1.msra.mxu0 0.0
    %782 = vmatprep.subr.mxu0 0.0
    %783 = vmatpush1.msra.mxu0 0.0
    %784 = vmatprep.subr.mxu0 0.0
    %785 = vmatpush1.msra.mxu0 0.0
    %786 = vmatprep.subr.mxu0 0.0
    %787 = vmatpush1.msra.mxu0 0.0
    %788 = vmatprep.subr.mxu0 0.0
    %789 = vmatpush1.msra.mxu0 0.0
    %790 = vmatprep.subr.mxu0 0.0
    %791 = vmatpush1.msra.mxu0 0.0
    %792 = vmatprep.subr.mxu0 0.0
    %793 = vmatpush1.msra.mxu0 0.0
    %794 = vmatprep.subr.mxu0 0.0
    %795 = vmatpush1.msra.mxu0 %v275
    %796 = vmatprep.subr.mxu0 0.0
    %797 = vmatpush1.msra.mxu0 %v274
    %798 = vmatprep.subr.mxu0 0.0
    %799 = vmatpush1.msra.mxu0 %v273
    %800 = vmatprep.subr.mxu0 0.0
    %801 = vmatpush1.msra.mxu0 %v272
    %802 = vmatprep.subr.mxu0 0.0
    %803 = vmatpush2.msra.mxu0 0.0
    %804 = vmatprep.subr.mxu0 0.0
    %805 = vmatpush2.msra.mxu0 0.0
    %806 = vmatprep.subr.mxu0 0.0
    %807 = vmatpush2.msra.mxu0 0.0
    %808 = vmatprep.subr.mxu0 0.0
    %809 = vmatpush2.msra.mxu0 0.0
    %810 = vmatprep.subr.mxu0 0.0
    %811 = vmatpush2.msra.mxu0 0.0
    %812 = vmatprep.subr.mxu0 0.0
    %813 = vmatpush2.msra.mxu0 0.0
    %814 = vmatprep.subr.mxu0 0.0
    %815 = vmatpush2.msra.mxu0 0.0
    %816 = vmatprep.subr.mxu0 0.0
    %817 = vmatpush2.msra.mxu0 0.0
    %818 = vmatprep.subr.mxu0 0.0
    %819 = vmatpush2.msra.mxu0 0.0
    %820 = vmatprep.subr.mxu0 0.0
    %821 = vmatpush2.msra.mxu0 0.0
    %822 = vmatprep.subr.mxu0 0.0
    %823 = vmatpush2.msra.mxu0 0.0
    %824 = vmatprep.subr.mxu0 0.0
    %825 = vmatpush2.msra.mxu0 0.0
    %826 = vmatprep.subr.mxu0 0.0
    %827 = vmatpush2.msra.mxu0 0.0
    %828 = vmatprep.subr.mxu0 0.0
    %829 = vmatpush2.msra.mxu0 0.0
    %830 = vmatprep.subr.mxu0 0.0
    %831 = vmatpush2.msra.mxu0 0.0
    %832 = vmatprep.subr.mxu0 0.0
    %833 = vmatpush2.msra.mxu0 0.0
    %834 = vmatprep.mubr.f32.mxu0 0.0
    %835 = vmatmul.mubr.f32.gmra.mxu0 %v768
    %v836 = vpop.f32.mrf.mxu0
    %v837 = vadd.f32 0.0, %v836
    %v838 = vpop.f32.mrf.mxu0
    %839 = vdwg.mxu0
    %840 = vrot.lane.b32.xlu0 %v752, 64
    %v841 = vpop.permute.xlu0 %840
    %v842 = vsel %vm295, %v841, 0
    %844 = vmatprep.subr.mxu0 0.0
    %845 = vmatpush1.msra.mxu0 0.0
    %846 = vmatprep.subr.mxu0 0.0
    %847 = vmatpush1.msra.mxu0 0.0
    %848 = vmatprep.subr.mxu0 0.0
    %849 = vmatpush1.msra.mxu0 0.0
    %850 = vmatprep.subr.mxu0 0.0
    %851 = vmatpush1.msra.mxu0 0.0
    %852 = vmatprep.subr.mxu0 0.0
    %853 = vmatpush1.msra.mxu0 0.0
    %854 = vmatprep.subr.mxu0 0.0
    %855 = vmatpush1.msra.mxu0 0.0
    %856 = vmatprep.subr.mxu0 0.0
    %857 = vmatpush1.msra.mxu0 0.0
    %858 = vmatprep.subr.mxu0 0.0
    %859 = vmatpush1.msra.mxu0 0.0
    %860 = vmatprep.subr.mxu0 0.0
    %861 = vmatpush1.msra.mxu0 0.0
    %862 = vmatprep.subr.mxu0 0.0
    %863 = vmatpush1.msra.mxu0 0.0
    %864 = vmatprep.subr.mxu0 0.0
    %865 = vmatpush1.msra.mxu0 0.0
    %866 = vmatprep.subr.mxu0 0.0
    %867 = vmatpush1.msra.mxu0 0.0
    %868 = vmatprep.subr.mxu0 0.0
    %869 = vmatpush1.msra.mxu0 %v279
    %870 = vmatprep.subr.mxu0 0.0
    %871 = vmatpush1.msra.mxu0 %v278
    %872 = vmatprep.subr.mxu0 0.0
    %873 = vmatpush1.msra.mxu0 %v277
    %874 = vmatprep.subr.mxu0 0.0
    %875 = vmatpush1.msra.mxu0 %v276
    %876 = vmatprep.subr.mxu0 0.0
    %877 = vmatpush2.msra.mxu0 0.0
    %878 = vmatprep.subr.mxu0 0.0
    %879 = vmatpush2.msra.mxu0 0.0
    %880 = vmatprep.subr.mxu0 0.0
    %881 = vmatpush2.msra.mxu0 0.0
    %882 = vmatprep.subr.mxu0 0.0
    %883 = vmatpush2.msra.mxu0 0.0
    %884 = vmatprep.subr.mxu0 0.0
    %885 = vmatpush2.msra.mxu0 0.0
    %886 = vmatprep.subr.mxu0 0.0
    %887 = vmatpush2.msra.mxu0 0.0
    %888 = vmatprep.subr.mxu0 0.0
    %889 = vmatpush2.msra.mxu0 0.0
    %890 = vmatprep.subr.mxu0 0.0
    %891 = vmatpush2.msra.mxu0 0.0
    %892 = vmatprep.subr.mxu0 0.0
    %893 = vmatpush2.msra.mxu0 0.0
    %894 = vmatprep.subr.mxu0 0.0
    %895 = vmatpush2.msra.mxu0 0.0
    %896 = vmatprep.subr.mxu0 0.0
    %897 = vmatpush2.msra.mxu0 0.0
    %898 = vmatprep.subr.mxu0 0.0
    %899 = vmatpush2.msra.mxu0 0.0
    %900 = vmatprep.subr.mxu0 0.0
    %901 = vmatpush2.msra.mxu0 0.0
    %902 = vmatprep.subr.mxu0 0.0
    %903 = vmatpush2.msra.mxu0 0.0
    %904 = vmatprep.subr.mxu0 0.0
    %905 = vmatpush2.msra.mxu0 0.0
    %906 = vmatprep.subr.mxu0 0.0
    %907 = vmatpush2.msra.mxu0 0.0
    %908 = vmatprep.mubr.f32.mxu0 0.0
    %909 = vmatmul.mubr.f32.gmra.mxu0 %v842
    %v910 = vpop.f32.mrf.mxu0
    %v911 = vadd.f32 0.0, %v910
    %v912 = vpop.f32.mrf.mxu0
    %913 = vdwg.mxu0
    %v914 = vadd.f32 %v165, %v837
    %v915 = vxor.u32 %v914, 2147483648
    %v916 = vmul.f32 %v915, 1.442695
    %v917 = vpow.pop %v916
    %v918 = vadd.f32 %v917, 1.0
    %v919 = vrcp.pop %v918
    %v920 = vmul.f32 1.0, %v919
    %v921 = vadd.f32 %v837, %v450
    %923 = vrot.lane.b32.xlu0 %v921, 64
    %v924 = vpop.permute.xlu0 %923
    %v926 = vmul.f32 %v920, %v924
    %928 = vrot.lane.b32.xlu0 %v926, 64
    %v929 = vpop.permute.xlu0 %928
    %v931 = vadd.f32 %v165, %v929
    %v932 = vtanh.pop %v931
    %v934 = vrot.slane %v932, 4
    %v936 = vsub.f32 %v718, %v934
    %v938 = vrot.slane %v936, 4
    %939 = vrot.lane.b32.xlu0 %v938, 96
    %v940 = vpop.permute.xlu0 %939
    %v942 = vmul.f32 %v920, %v940
    %944 = vrot.lane.b32.xlu0 %v942, 32
    %v945 = vpop.permute.xlu0 %944
    %v947 = vadd.f32 %v932, %v945
    %v949 = vrot.slane %v911, 4
    %v951 = vadd.f32 %v264, %v949
    %v952 = vxor.u32 %v951, 2147483648
    %v953 = vmul.f32 %v952, 1.442695
    %v954 = vpow.pop %v953
    %v955 = vadd.f32 %v954, 1.0
    %v956 = vrcp.pop %v955
    %v957 = vmul.f32 1.0, %v956
    %v958 = vadd.f32 %v911, %v490
    %v960 = vrot.slane %v958, 4
    %961 = vrot.lane.b32.xlu0 %v960, 64
    %v962 = vpop.permute.xlu0 %961
    %v964 = vmul.f32 %v957, %v962
    %966 = vrot.lane.b32.xlu0 %v964, 64
    %v967 = vpop.permute.xlu0 %966
    %v969 = vadd.f32 %v264, %v967
    %v970 = vtanh.pop %v969
    %v972 = vrot.slane %v970, 4
    %v974 = vsub.f32 %v752, %v972
    %v976 = vrot.slane %v974, 4
    %977 = vrot.lane.b32.xlu0 %v976, 96
    %v978 = vpop.permute.xlu0 %977
    %v980 = vmul.f32 %v957, %v978
    %982 = vrot.lane.b32.xlu0 %v980, 32
    %v983 = vpop.permute.xlu0 %982
    %v985 = vadd.f32 %v970, %v983
    %987 = vrot.lane.b32.xlu0 %v947, 64
    %v988 = vpop.permute.xlu0 %987
    %990 = vst.msk [vmem:[#allocation7 + $0x8] sm:$0xf] %vm526, %v988
    %992 = vrot.lane.b32.xlu0 %v985, 96
    %v993 = vpop.permute.xlu0 %992
    %995 = vst.msk [vmem:[#allocation7 + $0x10] sm:$0xf0] %vm532, %v993
    %v996 = vsel %vm295, %v988, 0
    %998 = vmatprep.subr.mxu0 0.0
    %999 = vmatpush1.msra.mxu0 0.0
    %1000 = vmatprep.subr.mxu0 0.0
    %1001 = vmatpush1.msra.mxu0 0.0
    %1002 = vmatprep.subr.mxu0 0.0
    %1003 = vmatpush1.msra.mxu0 0.0
    %1004 = vmatprep.subr.mxu0 0.0
    %1005 = vmatpush1.msra.mxu0 0.0
    %1006 = vmatprep.subr.mxu0 0.0
    %1007 = vmatpush1.msra.mxu0 0.0
    %1008 = vmatprep.subr.mxu0 0.0
    %1009 = vmatpush1.msra.mxu0 0.0
    %1010 = vmatprep.subr.mxu0 0.0
    %1011 = vmatpush1.msra.mxu0 0.0
    %1012 = vmatprep.subr.mxu0 0.0
    %1013 = vmatpush1.msra.mxu0 0.0
    %1014 = vmatprep.subr.mxu0 0.0
    %1015 = vmatpush1.msra.mxu0 0.0
    %1016 = vmatprep.subr.mxu0 0.0
    %1017 = vmatpush1.msra.mxu0 0.0
    %1018 = vmatprep.subr.mxu0 0.0
    %1019 = vmatpush1.msra.mxu0 0.0
    %1020 = vmatprep.subr.mxu0 0.0
    %1021 = vmatpush1.msra.mxu0 0.0
    %1022 = vmatprep.subr.mxu0 0.0
    %1023 = vmatpush1.msra.mxu0 %v275
    %1024 = vmatprep.subr.mxu0 0.0
    %1025 = vmatpush1.msra.mxu0 %v274
    %1026 = vmatprep.subr.mxu0 0.0
    %1027 = vmatpush1.msra.mxu0 %v273
    %1028 = vmatprep.subr.mxu0 0.0
    %1029 = vmatpush1.msra.mxu0 %v272
    %1030 = vmatprep.subr.mxu0 0.0
    %1031 = vmatpush2.msra.mxu0 0.0
    %1032 = vmatprep.subr.mxu0 0.0
    %1033 = vmatpush2.msra.mxu0 0.0
    %1034 = vmatprep.subr.mxu0 0.0
    %1035 = vmatpush2.msra.mxu0 0.0
    %1036 = vmatprep.subr.mxu0 0.0
    %1037 = vmatpush2.msra.mxu0 0.0
    %1038 = vmatprep.subr.mxu0 0.0
    %1039 = vmatpush2.msra.mxu0 0.0
    %1040 = vmatprep.subr.mxu0 0.0
    %1041 = vmatpush2.msra.mxu0 0.0
    %1042 = vmatprep.subr.mxu0 0.0
    %1043 = vmatpush2.msra.mxu0 0.0
    %1044 = vmatprep.subr.mxu0 0.0
    %1045 = vmatpush2.msra.mxu0 0.0
    %1046 = vmatprep.subr.mxu0 0.0
    %1047 = vmatpush2.msra.mxu0 0.0
    %1048 = vmatprep.subr.mxu0 0.0
    %1049 = vmatpush2.msra.mxu0 0.0
    %1050 = vmatprep.subr.mxu0 0.0
    %1051 = vmatpush2.msra.mxu0 0.0
    %1052 = vmatprep.subr.mxu0 0.0
    %1053 = vmatpush2.msra.mxu0 0.0
    %1054 = vmatprep.subr.mxu0 0.0
    %1055 = vmatpush2.msra.mxu0 0.0
    %1056 = vmatprep.subr.mxu0 0.0
    %1057 = vmatpush2.msra.mxu0 0.0
    %1058 = vmatprep.subr.mxu0 0.0
    %1059 = vmatpush2.msra.mxu0 0.0
    %1060 = vmatprep.subr.mxu0 0.0
    %1061 = vmatpush2.msra.mxu0 0.0
    %1062 = vmatprep.mubr.f32.mxu0 0.0
    %1063 = vmatmul.mubr.f32.gmra.mxu0 %v996
    %v1064 = vpop.f32.mrf.mxu0
    %v1065 = vadd.f32 0.0, %v1064
    %v1066 = vpop.f32.mrf.mxu0
    %1067 = vdwg.mxu0
    %v1068 = vrot.slane %v985, 4
    %1069 = vrot.lane.b32.xlu0 %v1068, 64
    %v1070 = vpop.permute.xlu0 %1069
    %v1071 = vsel %vm295, %v1070, 0
    %1073 = vmatprep.subr.mxu0 0.0
    %1074 = vmatpush1.msra.mxu0 0.0
    %1075 = vmatprep.subr.mxu0 0.0
    %1076 = vmatpush1.msra.mxu0 0.0
    %1077 = vmatprep.subr.mxu0 0.0
    %1078 = vmatpush1.msra.mxu0 0.0
    %1079 = vmatprep.subr.mxu0 0.0
    %1080 = vmatpush1.msra.mxu0 0.0
    %1081 = vmatprep.subr.mxu0 0.0
    %1082 = vmatpush1.msra.mxu0 0.0
    %1083 = vmatprep.subr.mxu0 0.0
    %1084 = vmatpush1.msra.mxu0 0.0
    %1085 = vmatprep.subr.mxu0 0.0
    %1086 = vmatpush1.msra.mxu0 0.0
    %1087 = vmatprep.subr.mxu0 0.0
    %1088 = vmatpush1.msra.mxu0 0.0
    %1089 = vmatprep.subr.mxu0 0.0
    %1090 = vmatpush1.msra.mxu0 0.0
    %1091 = vmatprep.subr.mxu0 0.0
    %1092 = vmatpush1.msra.mxu0 0.0
    %1093 = vmatprep.subr.mxu0 0.0
    %1094 = vmatpush1.msra.mxu0 0.0
    %1095 = vmatprep.subr.mxu0 0.0
    %1096 = vmatpush1.msra.mxu0 0.0
    %1097 = vmatprep.subr.mxu0 0.0
    %1098 = vmatpush1.msra.mxu0 %v279
    %1099 = vmatprep.subr.mxu0 0.0
    %1100 = vmatpush1.msra.mxu0 %v278
    %1101 = vmatprep.subr.mxu0 0.0
    %1102 = vmatpush1.msra.mxu0 %v277
    %1103 = vmatprep.subr.mxu0 0.0
    %1104 = vmatpush1.msra.mxu0 %v276
    %1105 = vmatprep.subr.mxu0 0.0
    %1106 = vmatpush2.msra.mxu0 0.0
    %1107 = vmatprep.subr.mxu0 0.0
    %1108 = vmatpush2.msra.mxu0 0.0
    %1109 = vmatprep.subr.mxu0 0.0
    %1110 = vmatpush2.msra.mxu0 0.0
    %1111 = vmatprep.subr.mxu0 0.0
    %1112 = vmatpush2.msra.mxu0 0.0
    %1113 = vmatprep.subr.mxu0 0.0
    %1114 = vmatpush2.msra.mxu0 0.0
    %1115 = vmatprep.subr.mxu0 0.0
    %1116 = vmatpush2.msra.mxu0 0.0
    %1117 = vmatprep.subr.mxu0 0.0
    %1118 = vmatpush2.msra.mxu0 0.0
    %1119 = vmatprep.subr.mxu0 0.0
    %1120 = vmatpush2.msra.mxu0 0.0
    %1121 = vmatprep.subr.mxu0 0.0
    %1122 = vmatpush2.msra.mxu0 0.0
    %1123 = vmatprep.subr.mxu0 0.0
    %1124 = vmatpush2.msra.mxu0 0.0
    %1125 = vmatprep.subr.mxu0 0.0
    %1126 = vmatpush2.msra.mxu0 0.0
    %1127 = vmatprep.subr.mxu0 0.0
    %1128 = vmatpush2.msra.mxu0 0.0
    %1129 = vmatprep.subr.mxu0 0.0
    %1130 = vmatpush2.msra.mxu0 0.0
    %1131 = vmatprep.subr.mxu0 0.0
    %1132 = vmatpush2.msra.mxu0 0.0
    %1133 = vmatprep.subr.mxu0 0.0
    %1134 = vmatpush2.msra.mxu0 0.0
    %1135 = vmatprep.subr.mxu0 0.0
    %1136 = vmatpush2.msra.mxu0 0.0
    %1137 = vmatprep.mubr.f32.mxu0 0.0
    %1138 = vmatmul.mubr.f32.gmra.mxu0 %v1071
    %v1139 = vpop.f32.mrf.mxu0
    %v1140 = vadd.f32 0.0, %v1139
    %v1141 = vpop.f32.mrf.mxu0
    %1142 = vdwg.mxu0
    %v1144 = vrot.slane %v1065, 4
    %v1146 = vadd.f32 %v165, %v1144
    %v1147 = vxor.u32 %v1146, 2147483648
    %v1148 = vmul.f32 %v1147, 1.442695
    %v1149 = vpow.pop %v1148
    %v1150 = vadd.f32 %v1149, 1.0
    %v1151 = vrcp.pop %v1150
    %v1152 = vmul.f32 1.0, %v1151
    %v1153 = vadd.f32 %v1065, %v450
    %v1155 = vrot.slane %v1153, 4
    %1156 = vrot.lane.b32.xlu0 %v1155, 64
    %v1157 = vpop.permute.xlu0 %1156
    %v1159 = vmul.f32 %v1152, %v1157
    %1161 = vrot.lane.b32.xlu0 %v1159, 64
    %v1162 = vpop.permute.xlu0 %1161
    %v1164 = vadd.f32 %v165, %v1162
    %v1165 = vtanh.pop %v1164
    %v1167 = vrot.slane %v1165, 4
    %v1169 = vsub.f32 %v947, %v1167
    %v1171 = vrot.slane %v1169, 4
    %1172 = vrot.lane.b32.xlu0 %v1171, 96
    %v1173 = vpop.permute.xlu0 %1172
    %v1175 = vmul.f32 %v1152, %v1173
    %1177 = vrot.lane.b32.xlu0 %v1175, 32
    %v1178 = vpop.permute.xlu0 %1177
    %v1180 = vadd.f32 %v1165, %v1178
    %v1181 = vadd.f32 %v264, %v1140
    %v1182 = vxor.u32 %v1181, 2147483648
    %v1183 = vmul.f32 %v1182, 1.442695
    %v1184 = vpow.pop %v1183
    %v1185 = vadd.f32 %v1184, 1.0
    %v1186 = vrcp.pop %v1185
    %v1187 = vmul.f32 1.0, %v1186
    %v1188 = vadd.f32 %v1140, %v490
    %1190 = vrot.lane.b32.xlu0 %v1188, 64
    %v1191 = vpop.permute.xlu0 %1190
    %v1193 = vmul.f32 %v1187, %v1191
    %1195 = vrot.lane.b32.xlu0 %v1193, 64
    %v1196 = vpop.permute.xlu0 %1195
    %v1198 = vadd.f32 %v264, %v1196
    %v1199 = vtanh.pop %v1198
    %v1201 = vrot.slane %v1199, 4
    %v1203 = vsub.f32 %v985, %v1201
    %v1205 = vrot.slane %v1203, 4
    %1206 = vrot.lane.b32.xlu0 %v1205, 96
    %v1207 = vpop.permute.xlu0 %1206
    %v1209 = vmul.f32 %v1187, %v1207
    %1211 = vrot.lane.b32.xlu0 %v1209, 32
    %v1212 = vpop.permute.xlu0 %1211
    %v1214 = vadd.f32 %v1199, %v1212
    %1216 = vrot.lane.b32.xlu0 %v1180, 64
    %v1217 = vpop.permute.xlu0 %1216
    %1219 = vst.msk [vmem:[#allocation7 + $0x8] sm:$0xf0] %vm757, %v1217
    %1221 = vrot.lane.b32.xlu0 %v1214, 96
    %v1222 = vpop.permute.xlu0 %1221
    %1224 = vst.msk [vmem:[#allocation7 + $0x10] sm:$0xf] %vm763, %v1222
    %v1225 = vrot.slane %v1180, 4
    %1226 = vrot.lane.b32.xlu0 %v1225, 64
    %v1227 = vpop.permute.xlu0 %1226
    %v1228 = vsel %vm295, %v1227, 0
    %1230 = vmatprep.subr.mxu0 0.0
    %1231 = vmatpush1.msra.mxu0 0.0
    %1232 = vmatprep.subr.mxu0 0.0
    %1233 = vmatpush1.msra.mxu0 0.0
    %1234 = vmatprep.subr.mxu0 0.0
    %1235 = vmatpush1.msra.mxu0 0.0
    %1236 = vmatprep.subr.mxu0 0.0
    %1237 = vmatpush1.msra.mxu0 0.0
    %1238 = vmatprep.subr.mxu0 0.0
    %1239 = vmatpush1.msra.mxu0 0.0
    %1240 = vmatprep.subr.mxu0 0.0
    %1241 = vmatpush1.msra.mxu0 0.0
    %1242 = vmatprep.subr.mxu0 0.0
    %1243 = vmatpush1.msra.mxu0 0.0
    %1244 = vmatprep.subr.mxu0 0.0
    %1245 = vmatpush1.msra.mxu0 0.0
    %1246 = vmatprep.subr.mxu0 0.0
    %1247 = vmatpush1.msra.mxu0 0.0
    %1248 = vmatprep.subr.mxu0 0.0
    %1249 = vmatpush1.msra.mxu0 0.0
    %1250 = vmatprep.subr.mxu0 0.0
    %1251 = vmatpush1.msra.mxu0 0.0
    %1252 = vmatprep.subr.mxu0 0.0
    %1253 = vmatpush1.msra.mxu0 0.0
    %1254 = vmatprep.subr.mxu0 0.0
    %1255 = vmatpush1.msra.mxu0 %v275
    %1256 = vmatprep.subr.mxu0 0.0
    %1257 = vmatpush1.msra.mxu0 %v274
    %1258 = vmatprep.subr.mxu0 0.0
    %1259 = vmatpush1.msra.mxu0 %v273
    %1260 = vmatprep.subr.mxu0 0.0
    %1261 = vmatpush1.msra.mxu0 %v272
    %1262 = vmatprep.subr.mxu0 0.0
    %1263 = vmatpush2.msra.mxu0 0.0
    %1264 = vmatprep.subr.mxu0 0.0
    %1265 = vmatpush2.msra.mxu0 0.0
    %1266 = vmatprep.subr.mxu0 0.0
    %1267 = vmatpush2.msra.mxu0 0.0
    %1268 = vmatprep.subr.mxu0 0.0
    %1269 = vmatpush2.msra.mxu0 0.0
    %1270 = vmatprep.subr.mxu0 0.0
    %1271 = vmatpush2.msra.mxu0 0.0
    %1272 = vmatprep.subr.mxu0 0.0
    %1273 = vmatpush2.msra.mxu0 0.0
    %1274 = vmatprep.subr.mxu0 0.0
    %1275 = vmatpush2.msra.mxu0 0.0
    %1276 = vmatprep.subr.mxu0 0.0
    %1277 = vmatpush2.msra.mxu0 0.0
    %1278 = vmatprep.subr.mxu0 0.0
    %1279 = vmatpush2.msra.mxu0 0.0
    %1280 = vmatprep.subr.mxu0 0.0
    %1281 = vmatpush2.msra.mxu0 0.0
    %1282 = vmatprep.subr.mxu0 0.0
    %1283 = vmatpush2.msra.mxu0 0.0
    %1284 = vmatprep.subr.mxu0 0.0
    %1285 = vmatpush2.msra.mxu0 0.0
    %1286 = vmatprep.subr.mxu0 0.0
    %1287 = vmatpush2.msra.mxu0 0.0
    %1288 = vmatprep.subr.mxu0 0.0
    %1289 = vmatpush2.msra.mxu0 0.0
    %1290 = vmatprep.subr.mxu0 0.0
    %1291 = vmatpush2.msra.mxu0 0.0
    %1292 = vmatprep.subr.mxu0 0.0
    %1293 = vmatpush2.msra.mxu0 0.0
    %1294 = vmatprep.mubr.f32.mxu0 0.0
    %1295 = vmatmul.mubr.f32.gmra.mxu0 %v1228
    %v1296 = vpop.f32.mrf.mxu0
    %v1297 = vadd.f32 0.0, %v1296
    %v1298 = vpop.f32.mrf.mxu0
    %1299 = vdwg.mxu0
    %1300 = vrot.lane.b32.xlu0 %v1214, 64
    %v1301 = vpop.permute.xlu0 %1300
    %v1302 = vsel %vm295, %v1301, 0
    %1304 = vmatprep.subr.mxu0 0.0
    %1305 = vmatpush1.msra.mxu0 0.0
    %1306 = vmatprep.subr.mxu0 0.0
    %1307 = vmatpush1.msra.mxu0 0.0
    %1308 = vmatprep.subr.mxu0 0.0
    %1309 = vmatpush1.msra.mxu0 0.0
    %1310 = vmatprep.subr.mxu0 0.0
    %1311 = vmatpush1.msra.mxu0 0.0
    %1312 = vmatprep.subr.mxu0 0.0
    %1313 = vmatpush1.msra.mxu0 0.0
    %1314 = vmatprep.subr.mxu0 0.0
    %1315 = vmatpush1.msra.mxu0 0.0
    %1316 = vmatprep.subr.mxu0 0.0
    %1317 = vmatpush1.msra.mxu0 0.0
    %1318 = vmatprep.subr.mxu0 0.0
    %1319 = vmatpush1.msra.mxu0 0.0
    %1320 = vmatprep.subr.mxu0 0.0
    %1321 = vmatpush1.msra.mxu0 0.0
    %1322 = vmatprep.subr.mxu0 0.0
    %1323 = vmatpush1.msra.mxu0 0.0
    %1324 = vmatprep.subr.mxu0 0.0
    %1325 = vmatpush1.msra.mxu0 0.0
    %1326 = vmatprep.subr.mxu0 0.0
    %1327 = vmatpush1.msra.mxu0 0.0
    %1328 = vmatprep.subr.mxu0 0.0
    %1329 = vmatpush1.msra.mxu0 %v279
    %1330 = vmatprep.subr.mxu0 0.0
    %1331 = vmatpush1.msra.mxu0 %v278
    %1332 = vmatprep.subr.mxu0 0.0
    %1333 = vmatpush1.msra.mxu0 %v277
    %1334 = vmatprep.subr.mxu0 0.0
    %1335 = vmatpush1.msra.mxu0 %v276
    %1336 = vmatprep.subr.mxu0 0.0
    %1337 = vmatpush2.msra.mxu0 0.0
    %1338 = vmatprep.subr.mxu0 0.0
    %1339 = vmatpush2.msra.mxu0 0.0
    %1340 = vmatprep.subr.mxu0 0.0
    %1341 = vmatpush2.msra.mxu0 0.0
    %1342 = vmatprep.subr.mxu0 0.0
    %1343 = vmatpush2.msra.mxu0 0.0
    %1344 = vmatprep.subr.mxu0 0.0
    %1345 = vmatpush2.msra.mxu0 0.0
    %1346 = vmatprep.subr.mxu0 0.0
    %1347 = vmatpush2.msra.mxu0 0.0
    %1348 = vmatprep.subr.mxu0 0.0
    %1349 = vmatpush2.msra.mxu0 0.0
    %1350 = vmatprep.subr.mxu0 0.0
    %1351 = vmatpush2.msra.mxu0 0.0
    %1352 = vmatprep.subr.mxu0 0.0
    %1353 = vmatpush2.msra.mxu0 0.0
    %1354 = vmatprep.subr.mxu0 0.0
    %1355 = vmatpush2.msra.mxu0 0.0
    %1356 = vmatprep.subr.mxu0 0.0
    %1357 = vmatpush2.msra.mxu0 0.0
    %1358 = vmatprep.subr.mxu0 0.0
    %1359 = vmatpush2.msra.mxu0 0.0
    %1360 = vmatprep.subr.mxu0 0.0
    %1361 = vmatpush2.msra.mxu0 0.0
    %1362 = vmatprep.subr.mxu0 0.0
    %1363 = vmatpush2.msra.mxu0 0.0
    %1364 = vmatprep.subr.mxu0 0.0
    %1365 = vmatpush2.msra.mxu0 0.0
    %1366 = vmatprep.subr.mxu0 0.0
    %1367 = vmatpush2.msra.mxu0 0.0
    %1368 = vmatprep.mubr.f32.mxu0 0.0
    %1369 = vmatmul.mubr.f32.gmra.mxu0 %v1302
    %v1370 = vpop.f32.mrf.mxu0
    %v1371 = vadd.f32 0.0, %v1370
    %v1372 = vpop.f32.mrf.mxu0
    %1373 = vdwg.mxu0
    %v1374 = vadd.f32 %v170, %v1297
    %v1375 = vxor.u32 %v1374, 2147483648
    %v1376 = vmul.f32 %v1375, 1.442695
    %v1377 = vpow.pop %v1376
    %v1378 = vadd.f32 %v1377, 1.0
    %v1379 = vrcp.pop %v1378
    %v1380 = vmul.f32 1.0, %v1379
    %v1381 = vadd.f32 %v1297, %v450
    %1383 = vrot.lane.b32.xlu0 %v1381, 64
    %v1384 = vpop.permute.xlu0 %1383
    %v1386 = vmul.f32 %v1380, %v1384
    %1388 = vrot.lane.b32.xlu0 %v1386, 64
    %v1389 = vpop.permute.xlu0 %1388
    %v1391 = vadd.f32 %v170, %v1389
    %v1392 = vtanh.pop %v1391
    %v1394 = vrot.slane %v1392, 4
    %v1396 = vsub.f32 %v1180, %v1394
    %v1398 = vrot.slane %v1396, 4
    %1399 = vrot.lane.b32.xlu0 %v1398, 96
    %v1400 = vpop.permute.xlu0 %1399
    %v1402 = vmul.f32 %v1380, %v1400
    %1404 = vrot.lane.b32.xlu0 %v1402, 32
    %v1405 = vpop.permute.xlu0 %1404
    %v1407 = vadd.f32 %v1392, %v1405
    %v1409 = vrot.slane %v1371, 4
    %v1411 = vadd.f32 %v259, %v1409
    %v1412 = vxor.u32 %v1411, 2147483648
    %v1413 = vmul.f32 %v1412, 1.442695
    %v1414 = vpow.pop %v1413
    %v1415 = vadd.f32 %v1414, 1.0
    %v1416 = vrcp.pop %v1415
    %v1417 = vmul.f32 1.0, %v1416
    %v1418 = vadd.f32 %v1371, %v490
    %v1420 = vrot.slane %v1418, 4
    %1421 = vrot.lane.b32.xlu0 %v1420, 64
    %v1422 = vpop.permute.xlu0 %1421
    %v1424 = vmul.f32 %v1417, %v1422
    %1426 = vrot.lane.b32.xlu0 %v1424, 64
    %v1427 = vpop.permute.xlu0 %1426
    %v1429 = vadd.f32 %v259, %v1427
    %v1430 = vtanh.pop %v1429
    %v1432 = vrot.slane %v1430, 4
    %v1434 = vsub.f32 %v1214, %v1432
    %v1436 = vrot.slane %v1434, 4
    %1437 = vrot.lane.b32.xlu0 %v1436, 96
    %v1438 = vpop.permute.xlu0 %1437
    %v1440 = vmul.f32 %v1417, %v1438
    %1442 = vrot.lane.b32.xlu0 %v1440, 32
    %v1443 = vpop.permute.xlu0 %1442
    %v1445 = vadd.f32 %v1430, %v1443
    %1447 = vrot.lane.b32.xlu0 %v1407, 64
    %v1448 = vpop.permute.xlu0 %1447
    %1450 = vst.msk [vmem:[#allocation7 + $0x10] sm:$0xf] %vm526, %v1448
    %1452 = vrot.lane.b32.xlu0 %v1445, 96
    %v1453 = vpop.permute.xlu0 %1452
    %1455 = vst.msk [vmem:[#allocation7 + $0x8] sm:$0xf0] %vm532, %v1453
    %v1456 = vsel %vm295, %v1448, 0
    %1458 = vmatprep.subr.mxu0 0.0
    %1459 = vmatpush1.msra.mxu0 0.0
    %1460 = vmatprep.subr.mxu0 0.0
    %1461 = vmatpush1.msra.mxu0 0.0
    %1462 = vmatprep.subr.mxu0 0.0
    %1463 = vmatpush1.msra.mxu0 0.0
    %1464 = vmatprep.subr.mxu0 0.0
    %1465 = vmatpush1.msra.mxu0 0.0
    %1466 = vmatprep.subr.mxu0 0.0
    %1467 = vmatpush1.msra.mxu0 0.0
    %1468 = vmatprep.subr.mxu0 0.0
    %1469 = vmatpush1.msra.mxu0 0.0
    %1470 = vmatprep.subr.mxu0 0.0
    %1471 = vmatpush1.msra.mxu0 0.0
    %1472 = vmatprep.subr.mxu0 0.0
    %1473 = vmatpush1.msra.mxu0 0.0
    %1474 = vmatprep.subr.mxu0 0.0
    %1475 = vmatpush1.msra.mxu0 0.0
    %1476 = vmatprep.subr.mxu0 0.0
    %1477 = vmatpush1.msra.mxu0 0.0
    %1478 = vmatprep.subr.mxu0 0.0
    %1479 = vmatpush1.msra.mxu0 0.0
    %1480 = vmatprep.subr.mxu0 0.0
    %1481 = vmatpush1.msra.mxu0 0.0
    %1482 = vmatprep.subr.mxu0 0.0
    %1483 = vmatpush1.msra.mxu0 %v275
    %1484 = vmatprep.subr.mxu0 0.0
    %1485 = vmatpush1.msra.mxu0 %v274
    %1486 = vmatprep.subr.mxu0 0.0
    %1487 = vmatpush1.msra.mxu0 %v273
    %1488 = vmatprep.subr.mxu0 0.0
    %1489 = vmatpush1.msra.mxu0 %v272
    %1490 = vmatprep.subr.mxu0 0.0
    %1491 = vmatpush2.msra.mxu0 0.0
    %1492 = vmatprep.subr.mxu0 0.0
    %1493 = vmatpush2.msra.mxu0 0.0
    %1494 = vmatprep.subr.mxu0 0.0
    %1495 = vmatpush2.msra.mxu0 0.0
    %1496 = vmatprep.subr.mxu0 0.0
    %1497 = vmatpush2.msra.mxu0 0.0
    %1498 = vmatprep.subr.mxu0 0.0
    %1499 = vmatpush2.msra.mxu0 0.0
    %1500 = vmatprep.subr.mxu0 0.0
    %1501 = vmatpush2.msra.mxu0 0.0
    %1502 = vmatprep.subr.mxu0 0.0
    %1503 = vmatpush2.msra.mxu0 0.0
    %1504 = vmatprep.subr.mxu0 0.0
    %1505 = vmatpush2.msra.mxu0 0.0
    %1506 = vmatprep.subr.mxu0 0.0
    %1507 = vmatpush2.msra.mxu0 0.0
    %1508 = vmatprep.subr.mxu0 0.0
    %1509 = vmatpush2.msra.mxu0 0.0
    %1510 = vmatprep.subr.mxu0 0.0
    %1511 = vmatpush2.msra.mxu0 0.0
    %1512 = vmatprep.subr.mxu0 0.0
    %1513 = vmatpush2.msra.mxu0 0.0
    %1514 = vmatprep.subr.mxu0 0.0
    %1515 = vmatpush2.msra.mxu0 0.0
    %1516 = vmatprep.subr.mxu0 0.0
    %1517 = vmatpush2.msra.mxu0 0.0
    %1518 = vmatprep.subr.mxu0 0.0
    %1519 = vmatpush2.msra.mxu0 0.0
    %1520 = vmatprep.subr.mxu0 0.0
    %1521 = vmatpush2.msra.mxu0 0.0
    %1522 = vmatprep.mubr.f32.mxu0 0.0
    %1523 = vmatmul.mubr.f32.gmra.mxu0 %v1456
    %v1524 = vpop.f32.mrf.mxu0
    %v1525 = vadd.f32 0.0, %v1524
    %v1526 = vpop.f32.mrf.mxu0
    %1527 = vdwg.mxu0
    %v1528 = vrot.slane %v1445, 4
    %1529 = vrot.lane.b32.xlu0 %v1528, 64
    %v1530 = vpop.permute.xlu0 %1529
    %v1531 = vsel %vm295, %v1530, 0
    %1533 = vmatprep.subr.mxu0 0.0
    %1534 = vmatpush1.msra.mxu0 0.0
    %1535 = vmatprep.subr.mxu0 0.0
    %1536 = vmatpush1.msra.mxu0 0.0
    %1537 = vmatprep.subr.mxu0 0.0
    %1538 = vmatpush1.msra.mxu0 0.0
    %1539 = vmatprep.subr.mxu0 0.0
    %1540 = vmatpush1.msra.mxu0 0.0
    %1541 = vmatprep.subr.mxu0 0.0
    %1542 = vmatpush1.msra.mxu0 0.0
    %1543 = vmatprep.subr.mxu0 0.0
    %1544 = vmatpush1.msra.mxu0 0.0
    %1545 = vmatprep.subr.mxu0 0.0
    %1546 = vmatpush1.msra.mxu0 0.0
    %1547 = vmatprep.subr.mxu0 0.0
    %1548 = vmatpush1.msra.mxu0 0.0
    %1549 = vmatprep.subr.mxu0 0.0
    %1550 = vmatpush1.msra.mxu0 0.0
    %1551 = vmatprep.subr.mxu0 0.0
    %1552 = vmatpush1.msra.mxu0 0.0
    %1553 = vmatprep.subr.mxu0 0.0
    %1554 = vmatpush1.msra.mxu0 0.0
    %1555 = vmatprep.subr.mxu0 0.0
    %1556 = vmatpush1.msra.mxu0 0.0
    %1557 = vmatprep.subr.mxu0 0.0
    %1558 = vmatpush1.msra.mxu0 %v279
    %1559 = vmatprep.subr.mxu0 0.0
    %1560 = vmatpush1.msra.mxu0 %v278
    %1561 = vmatprep.subr.mxu0 0.0
    %1562 = vmatpush1.msra.mxu0 %v277
    %1563 = vmatprep.subr.mxu0 0.0
    %1564 = vmatpush1.msra.mxu0 %v276
    %1565 = vmatprep.subr.mxu0 0.0
    %1566 = vmatpush2.msra.mxu0 0.0
    %1567 = vmatprep.subr.mxu0 0.0
    %1568 = vmatpush2.msra.mxu0 0.0
    %1569 = vmatprep.subr.mxu0 0.0
    %1570 = vmatpush2.msra.mxu0 0.0
    %1571 = vmatprep.subr.mxu0 0.0
    %1572 = vmatpush2.msra.mxu0 0.0
    %1573 = vmatprep.subr.mxu0 0.0
    %1574 = vmatpush2.msra.mxu0 0.0
    %1575 = vmatprep.subr.mxu0 0.0
    %1576 = vmatpush2.msra.mxu0 0.0
    %1577 = vmatprep.subr.mxu0 0.0
    %1578 = vmatpush2.msra.mxu0 0.0
    %1579 = vmatprep.subr.mxu0 0.0
    %1580 = vmatpush2.msra.mxu0 0.0
    %1581 = vmatprep.subr.mxu0 0.0
    %1582 = vmatpush2.msra.mxu0 0.0
    %1583 = vmatprep.subr.mxu0 0.0
    %1584 = vmatpush2.msra.mxu0 0.0
    %1585 = vmatprep.subr.mxu0 0.0
    %1586 = vmatpush2.msra.mxu0 0.0
    %1587 = vmatprep.subr.mxu0 0.0
    %1588 = vmatpush2.msra.mxu0 0.0
    %1589 = vmatprep.subr.mxu0 0.0
    %1590 = vmatpush2.msra.mxu0 0.0
    %1591 = vmatprep.subr.mxu0 0.0
    %1592 = vmatpush2.msra.mxu0 0.0
    %1593 = vmatprep.subr.mxu0 0.0
    %1594 = vmatpush2.msra.mxu0 0.0
    %1595 = vmatprep.subr.mxu0 0.0
    %1596 = vmatpush2.msra.mxu0 0.0
    %1597 = vmatprep.mubr.f32.mxu0 0.0
    %1598 = vmatmul.mubr.f32.gmra.mxu0 %v1531
    %v1599 = vpop.f32.mrf.mxu0
    %v1600 = vadd.f32 0.0, %v1599
    %v1601 = vpop.f32.mrf.mxu0
    %1602 = vdwg.mxu0
    %v1604 = vrot.slane %v1525, 4
    %v1606 = vadd.f32 %v170, %v1604
    %v1607 = vxor.u32 %v1606, 2147483648
    %v1608 = vmul.f32 %v1607, 1.442695
    %v1609 = vpow.pop %v1608
    %v1610 = vadd.f32 %v1609, 1.0
    %v1611 = vrcp.pop %v1610
    %v1612 = vmul.f32 1.0, %v1611
    %v1613 = vadd.f32 %v1525, %v450
    %v1615 = vrot.slane %v1613, 4
    %1616 = vrot.lane.b32.xlu0 %v1615, 64
    %v1617 = vpop.permute.xlu0 %1616
    %v1619 = vmul.f32 %v1612, %v1617
    %1621 = vrot.lane.b32.xlu0 %v1619, 64
    %v1622 = vpop.permute.xlu0 %1621
    %v1624 = vadd.f32 %v170, %v1622
    %v1625 = vtanh.pop %v1624
    %v1627 = vrot.slane %v1625, 4
    %v1629 = vsub.f32 %v1407, %v1627
    %v1631 = vrot.slane %v1629, 4
    %1632 = vrot.lane.b32.xlu0 %v1631, 96
    %v1633 = vpop.permute.xlu0 %1632
    %v1635 = vmul.f32 %v1612, %v1633
    %1637 = vrot.lane.b32.xlu0 %v1635, 32
    %v1638 = vpop.permute.xlu0 %1637
    %v1640 = vadd.f32 %v1625, %v1638
    %v1641 = vadd.f32 %v259, %v1600
    %v1642 = vxor.u32 %v1641, 2147483648
    %v1643 = vmul.f32 %v1642, 1.442695
    %v1644 = vpow.pop %v1643
    %v1645 = vadd.f32 %v1644, 1.0
    %v1646 = vrcp.pop %v1645
    %v1647 = vmul.f32 1.0, %v1646
    %v1648 = vadd.f32 %v1600, %v490
    %1650 = vrot.lane.b32.xlu0 %v1648, 64
    %v1651 = vpop.permute.xlu0 %1650
    %v1653 = vmul.f32 %v1647, %v1651
    %1655 = vrot.lane.b32.xlu0 %v1653, 64
    %v1656 = vpop.permute.xlu0 %1655
    %v1658 = vadd.f32 %v259, %v1656
    %v1659 = vtanh.pop %v1658
    %v1661 = vrot.slane %v1659, 4
    %v1663 = vsub.f32 %v1445, %v1661
    %v1665 = vrot.slane %v1663, 4
    %1666 = vrot.lane.b32.xlu0 %v1665, 96
    %v1667 = vpop.permute.xlu0 %1666
    %v1669 = vmul.f32 %v1647, %v1667
    %1671 = vrot.lane.b32.xlu0 %v1669, 32
    %v1672 = vpop.permute.xlu0 %1671
    %v1674 = vadd.f32 %v1659, %v1672
    %1676 = vrot.lane.b32.xlu0 %v1640, 64
    %v1677 = vpop.permute.xlu0 %1676
    %1679 = vst.msk [vmem:[#allocation7 + $0x10] sm:$0xf0] %vm757, %v1677
    %1681 = vrot.lane.b32.xlu0 %v1674, 96
    %v1682 = vpop.permute.xlu0 %1681
    %1684 = vst.msk [vmem:[#allocation7 + $0x8] sm:$0xf] %vm763, %v1682
    %v1685 = vrot.slane %v1640, 4
    %1686 = vrot.lane.b32.xlu0 %v1685, 64
    %v1687 = vpop.permute.xlu0 %1686
    %v1688 = vsel %vm295, %v1687, 0
    %1690 = vmatprep.subr.mxu0 0.0
    %1691 = vmatpush1.msra.mxu0 0.0
    %1692 = vmatprep.subr.mxu0 0.0
    %1693 = vmatpush1.msra.mxu0 0.0
    %1694 = vmatprep.subr.mxu0 0.0
    %1695 = vmatpush1.msra.mxu0 0.0
    %1696 = vmatprep.subr.mxu0 0.0
    %1697 = vmatpush1.msra.mxu0 0.0
    %1698 = vmatprep.subr.mxu0 0.0
    %1699 = vmatpush1.msra.mxu0 0.0
    %1700 = vmatprep.subr.mxu0 0.0
    %1701 = vmatpush1.msra.mxu0 0.0
    %1702 = vmatprep.subr.mxu0 0.0
    %1703 = vmatpush1.msra.mxu0 0.0
    %1704 = vmatprep.subr.mxu0 0.0
    %1705 = vmatpush1.msra.mxu0 0.0
    %1706 = vmatprep.subr.mxu0 0.0
    %1707 = vmatpush1.msra.mxu0 0.0
    %1708 = vmatprep.subr.mxu0 0.0
    %1709 = vmatpush1.msra.mxu0 0.0
    %1710 = vmatprep.subr.mxu0 0.0
    %1711 = vmatpush1.msra.mxu0 0.0
    %1712 = vmatprep.subr.mxu0 0.0
    %1713 = vmatpush1.msra.mxu0 0.0
    %1714 = vmatprep.subr.mxu0 0.0
    %1715 = vmatpush1.msra.mxu0 %v275
    %1716 = vmatprep.subr.mxu0 0.0
    %1717 = vmatpush1.msra.mxu0 %v274
    %1718 = vmatprep.subr.mxu0 0.0
    %1719 = vmatpush1.msra.mxu0 %v273
    %1720 = vmatprep.subr.mxu0 0.0
    %1721 = vmatpush1.msra.mxu0 %v272
    %1722 = vmatprep.subr.mxu0 0.0
    %1723 = vmatpush2.msra.mxu0 0.0
    %1724 = vmatprep.subr.mxu0 0.0
    %1725 = vmatpush2.msra.mxu0 0.0
    %1726 = vmatprep.subr.mxu0 0.0
    %1727 = vmatpush2.msra.mxu0 0.0
    %1728 = vmatprep.subr.mxu0 0.0
    %1729 = vmatpush2.msra.mxu0 0.0
    %1730 = vmatprep.subr.mxu0 0.0
    %1731 = vmatpush2.msra.mxu0 0.0
    %1732 = vmatprep.subr.mxu0 0.0
    %1733 = vmatpush2.msra.mxu0 0.0
    %1734 = vmatprep.subr.mxu0 0.0
    %1735 = vmatpush2.msra.mxu0 0.0
    %1736 = vmatprep.subr.mxu0 0.0
    %1737 = vmatpush2.msra.mxu0 0.0
    %1738 = vmatprep.subr.mxu0 0.0
    %1739 = vmatpush2.msra.mxu0 0.0
    %1740 = vmatprep.subr.mxu0 0.0
    %1741 = vmatpush2.msra.mxu0 0.0
    %1742 = vmatprep.subr.mxu0 0.0
    %1743 = vmatpush2.msra.mxu0 0.0
    %1744 = vmatprep.subr.mxu0 0.0
    %1745 = vmatpush2.msra.mxu0 0.0
    %1746 = vmatprep.subr.mxu0 0.0
    %1747 = vmatpush2.msra.mxu0 0.0
    %1748 = vmatprep.subr.mxu0 0.0
    %1749 = vmatpush2.msra.mxu0 0.0
    %1750 = vmatprep.subr.mxu0 0.0
    %1751 = vmatpush2.msra.mxu0 0.0
    %1752 = vmatprep.subr.mxu0 0.0
    %1753 = vmatpush2.msra.mxu0 0.0
    %1754 = vmatprep.mubr.f32.mxu0 0.0
    %1755 = vmatmul.mubr.f32.gmra.mxu0 %v1688
    %v1756 = vpop.f32.mrf.mxu0
    %v1757 = vadd.f32 0.0, %v1756
    %v1758 = vpop.f32.mrf.mxu0
    %1759 = vdwg.mxu0
    %1760 = vrot.lane.b32.xlu0 %v1674, 64
    %v1761 = vpop.permute.xlu0 %1760
    %v1762 = vsel %vm295, %v1761, 0
    %1764 = vmatprep.subr.mxu0 0.0
    %1765 = vmatpush1.msra.mxu0 0.0
    %1766 = vmatprep.subr.mxu0 0.0
    %1767 = vmatpush1.msra.mxu0 0.0
    %1768 = vmatprep.subr.mxu0 0.0
    %1769 = vmatpush1.msra.mxu0 0.0
    %1770 = vmatprep.subr.mxu0 0.0
    %1771 = vmatpush1.msra.mxu0 0.0
    %1772 = vmatprep.subr.mxu0 0.0
    %1773 = vmatpush1.msra.mxu0 0.0
    %1774 = vmatprep.subr.mxu0 0.0
    %1775 = vmatpush1.msra.mxu0 0.0
    %1776 = vmatprep.subr.mxu0 0.0
    %1777 = vmatpush1.msra.mxu0 0.0
    %1778 = vmatprep.subr.mxu0 0.0
    %1779 = vmatpush1.msra.mxu0 0.0
    %1780 = vmatprep.subr.mxu0 0.0
    %1781 = vmatpush1.msra.mxu0 0.0
    %1782 = vmatprep.subr.mxu0 0.0
    %1783 = vmatpush1.msra.mxu0 0.0
    %1784 = vmatprep.subr.mxu0 0.0
    %1785 = vmatpush1.msra.mxu0 0.0
    %1786 = vmatprep.subr.mxu0 0.0
    %1787 = vmatpush1.msra.mxu0 0.0
    %1788 = vmatprep.subr.mxu0 0.0
    %1789 = vmatpush1.msra.mxu0 %v279
    %1790 = vmatprep.subr.mxu0 0.0
    %1791 = vmatpush1.msra.mxu0 %v278
    %1792 = vmatprep.subr.mxu0 0.0
    %1793 = vmatpush1.msra.mxu0 %v277
    %1794 = vmatprep.subr.mxu0 0.0
    %1795 = vmatpush1.msra.mxu0 %v276
    %1796 = vmatprep.subr.mxu0 0.0
    %1797 = vmatpush2.msra.mxu0 0.0
    %1798 = vmatprep.subr.mxu0 0.0
    %1799 = vmatpush2.msra.mxu0 0.0
    %1800 = vmatprep.subr.mxu0 0.0
    %1801 = vmatpush2.msra.mxu0 0.0
    %1802 = vmatprep.subr.mxu0 0.0
    %1803 = vmatpush2.msra.mxu0 0.0
    %1804 = vmatprep.subr.mxu0 0.0
    %1805 = vmatpush2.msra.mxu0 0.0
    %1806 = vmatprep.subr.mxu0 0.0
    %1807 = vmatpush2.msra.mxu0 0.0
    %1808 = vmatprep.subr.mxu0 0.0
    %1809 = vmatpush2.msra.mxu0 0.0
    %1810 = vmatprep.subr.mxu0 0.0
    %1811 = vmatpush2.msra.mxu0 0.0
    %1812 = vmatprep.subr.mxu0 0.0
    %1813 = vmatpush2.msra.mxu0 0.0
    %1814 = vmatprep.subr.mxu0 0.0
    %1815 = vmatpush2.msra.mxu0 0.0
    %1816 = vmatprep.subr.mxu0 0.0
    %1817 = vmatpush2.msra.mxu0 0.0
    %1818 = vmatprep.subr.mxu0 0.0
    %1819 = vmatpush2.msra.mxu0 0.0
    %1820 = vmatprep.subr.mxu0 0.0
    %1821 = vmatpush2.msra.mxu0 0.0
    %1822 = vmatprep.subr.mxu0 0.0
    %1823 = vmatpush2.msra.mxu0 0.0
    %1824 = vmatprep.subr.mxu0 0.0
    %1825 = vmatpush2.msra.mxu0 0.0
    %1826 = vmatprep.subr.mxu0 0.0
    %1827 = vmatpush2.msra.mxu0 0.0
    %1828 = vmatprep.mubr.f32.mxu0 0.0
    %1829 = vmatmul.mubr.f32.gmra.mxu0 %v1762
    %v1830 = vpop.f32.mrf.mxu0
    %v1831 = vadd.f32 0.0, %v1830
    %v1832 = vpop.f32.mrf.mxu0
    %1833 = vdwg.mxu0
    %v1834 = vadd.f32 %v175, %v1757
    %v1835 = vxor.u32 %v1834, 2147483648
    %v1836 = vmul.f32 %v1835, 1.442695
    %v1837 = vpow.pop %v1836
    %v1838 = vadd.f32 %v1837, 1.0
    %v1839 = vrcp.pop %v1838
    %v1840 = vmul.f32 1.0, %v1839
    %v1841 = vadd.f32 %v1757, %v450
    %1843 = vrot.lane.b32.xlu0 %v1841, 64
    %v1844 = vpop.permute.xlu0 %1843
    %v1846 = vmul.f32 %v1840, %v1844
    %1848 = vrot.lane.b32.xlu0 %v1846, 64
    %v1849 = vpop.permute.xlu0 %1848
    %v1851 = vadd.f32 %v175, %v1849
    %v1852 = vtanh.pop %v1851
    %v1854 = vrot.slane %v1852, 4
    %v1856 = vsub.f32 %v1640, %v1854
    %v1858 = vrot.slane %v1856, 4
    %1859 = vrot.lane.b32.xlu0 %v1858, 96
    %v1860 = vpop.permute.xlu0 %1859
    %v1862 = vmul.f32 %v1840, %v1860
    %1864 = vrot.lane.b32.xlu0 %v1862, 32
    %v1865 = vpop.permute.xlu0 %1864
    %v1867 = vadd.f32 %v1852, %v1865
    %v1869 = vrot.slane %v1831, 4
    %v1871 = vadd.f32 %v254, %v1869
    %v1872 = vxor.u32 %v1871, 2147483648
    %v1873 = vmul.f32 %v1872, 1.442695
    %v1874 = vpow.pop %v1873
    %v1875 = vadd.f32 %v1874, 1.0
    %v1876 = vrcp.pop %v1875
    %v1877 = vmul.f32 1.0, %v1876
    %v1878 = vadd.f32 %v1831, %v490
    %v1880 = vrot.slane %v1878, 4
    %1881 = vrot.lane.b32.xlu0 %v1880, 64
    %v1882 = vpop.permute.xlu0 %1881
    %v1884 = vmul.f32 %v1877, %v1882
    %1886 = vrot.lane.b32.xlu0 %v1884, 64
    %v1887 = vpop.permute.xlu0 %1886
    %v1889 = vadd.f32 %v254, %v1887
    %v1890 = vtanh.pop %v1889
    %v1892 = vrot.slane %v1890, 4
    %v1894 = vsub.f32 %v1674, %v1892
    %v1896 = vrot.slane %v1894, 4
    %1897 = vrot.lane.b32.xlu0 %v1896, 96
    %v1898 = vpop.permute.xlu0 %1897
    %v1900 = vmul.f32 %v1877, %v1898
    %1902 = vrot.lane.b32.xlu0 %v1900, 32
    %v1903 = vpop.permute.xlu0 %1902
    %v1905 = vadd.f32 %v1890, %v1903
    %1907 = vrot.lane.b32.xlu0 %v1867, 64
    %v1908 = vpop.permute.xlu0 %1907
    %1910 = vst.msk [vmem:[#allocation7 + $0x18] sm:$0xf] %vm526, %v1908
    %1912 = vrot.lane.b32.xlu0 %v1905, 96
    %v1913 = vpop.permute.xlu0 %1912
    %1915 = vst.msk [vmem:[#allocation7] sm:$0xf0] %vm532, %v1913
    %v1916 = vsel %vm295, %v1908, 0
    %1918 = vmatprep.subr.mxu0 0.0
    %1919 = vmatpush1.msra.mxu0 0.0
    %1920 = vmatprep.subr.mxu0 0.0
    %1921 = vmatpush1.msra.mxu0 0.0
    %1922 = vmatprep.subr.mxu0 0.0
    %1923 = vmatpush1.msra.mxu0 0.0
    %1924 = vmatprep.subr.mxu0 0.0
    %1925 = vmatpush1.msra.mxu0 0.0
    %1926 = vmatprep.subr.mxu0 0.0
    %1927 = vmatpush1.msra.mxu0 0.0
    %1928 = vmatprep.subr.mxu0 0.0
    %1929 = vmatpush1.msra.mxu0 0.0
    %1930 = vmatprep.subr.mxu0 0.0
    %1931 = vmatpush1.msra.mxu0 0.0
    %1932 = vmatprep.subr.mxu0 0.0
    %1933 = vmatpush1.msra.mxu0 0.0
    %1934 = vmatprep.subr.mxu0 0.0
    %1935 = vmatpush1.msra.mxu0 0.0
    %1936 = vmatprep.subr.mxu0 0.0
    %1937 = vmatpush1.msra.mxu0 0.0
    %1938 = vmatprep.subr.mxu0 0.0
    %1939 = vmatpush1.msra.mxu0 0.0
    %1940 = vmatprep.subr.mxu0 0.0
    %1941 = vmatpush1.msra.mxu0 0.0
    %1942 = vmatprep.subr.mxu0 0.0
    %1943 = vmatpush1.msra.mxu0 %v275
    %1944 = vmatprep.subr.mxu0 0.0
    %1945 = vmatpush1.msra.mxu0 %v274
    %1946 = vmatprep.subr.mxu0 0.0
    %1947 = vmatpush1.msra.mxu0 %v273
    %1948 = vmatprep.subr.mxu0 0.0
    %1949 = vmatpush1.msra.mxu0 %v272
    %1950 = vmatprep.subr.mxu0 0.0
    %1951 = vmatpush2.msra.mxu0 0.0
    %1952 = vmatprep.subr.mxu0 0.0
    %1953 = vmatpush2.msra.mxu0 0.0
    %1954 = vmatprep.subr.mxu0 0.0
    %1955 = vmatpush2.msra.mxu0 0.0
    %1956 = vmatprep.subr.mxu0 0.0
    %1957 = vmatpush2.msra.mxu0 0.0
    %1958 = vmatprep.subr.mxu0 0.0
    %1959 = vmatpush2.msra.mxu0 0.0
    %1960 = vmatprep.subr.mxu0 0.0
    %1961 = vmatpush2.msra.mxu0 0.0
    %1962 = vmatprep.subr.mxu0 0.0
    %1963 = vmatpush2.msra.mxu0 0.0
    %1964 = vmatprep.subr.mxu0 0.0
    %1965 = vmatpush2.msra.mxu0 0.0
    %1966 = vmatprep.subr.mxu0 0.0
    %1967 = vmatpush2.msra.mxu0 0.0
    %1968 = vmatprep.subr.mxu0 0.0
    %1969 = vmatpush2.msra.mxu0 0.0
    %1970 = vmatprep.subr.mxu0 0.0
    %1971 = vmatpush2.msra.mxu0 0.0
    %1972 = vmatprep.subr.mxu0 0.0
    %1973 = vmatpush2.msra.mxu0 0.0
    %1974 = vmatprep.subr.mxu0 0.0
    %1975 = vmatpush2.msra.mxu0 0.0
    %1976 = vmatprep.subr.mxu0 0.0
    %1977 = vmatpush2.msra.mxu0 0.0
    %1978 = vmatprep.subr.mxu0 0.0
    %1979 = vmatpush2.msra.mxu0 0.0
    %1980 = vmatprep.subr.mxu0 0.0
    %1981 = vmatpush2.msra.mxu0 0.0
    %1982 = vmatprep.mubr.f32.mxu0 0.0
    %1983 = vmatmul.mubr.f32.gmra.mxu0 %v1916
    %v1984 = vpop.f32.mrf.mxu0
    %v1985 = vadd.f32 0.0, %v1984
    %v1986 = vpop.f32.mrf.mxu0
    %1987 = vdwg.mxu0
    %v1988 = vrot.slane %v1905, 4
    %1989 = vrot.lane.b32.xlu0 %v1988, 64
    %v1990 = vpop.permute.xlu0 %1989
    %v1991 = vsel %vm295, %v1990, 0
    %1993 = vmatprep.subr.mxu0 0.0
    %1994 = vmatpush1.msra.mxu0 0.0
    %1995 = vmatprep.subr.mxu0 0.0
    %1996 = vmatpush1.msra.mxu0 0.0
    %1997 = vmatprep.subr.mxu0 0.0
    %1998 = vmatpush1.msra.mxu0 0.0
    %1999 = vmatprep.subr.mxu0 0.0
    %2000 = vmatpush1.msra.mxu0 0.0
    %2001 = vmatprep.subr.mxu0 0.0
    %2002 = vmatpush1.msra.mxu0 0.0
    %2003 = vmatprep.subr.mxu0 0.0
    %2004 = vmatpush1.msra.mxu0 0.0
    %2005 = vmatprep.subr.mxu0 0.0
    %2006 = vmatpush1.msra.mxu0 0.0
    %2007 = vmatprep.subr.mxu0 0.0
    %2008 = vmatpush1.msra.mxu0 0.0
    %2009 = vmatprep.subr.mxu0 0.0
    %2010 = vmatpush1.msra.mxu0 0.0
    %2011 = vmatprep.subr.mxu0 0.0
    %2012 = vmatpush1.msra.mxu0 0.0
    %2013 = vmatprep.subr.mxu0 0.0
    %2014 = vmatpush1.msra.mxu0 0.0
    %2015 = vmatprep.subr.mxu0 0.0
    %2016 = vmatpush1.msra.mxu0 0.0
    %2017 = vmatprep.subr.mxu0 0.0
    %2018 = vmatpush1.msra.mxu0 %v279
    %2019 = vmatprep.subr.mxu0 0.0
    %2020 = vmatpush1.msra.mxu0 %v278
    %2021 = vmatprep.subr.mxu0 0.0
    %2022 = vmatpush1.msra.mxu0 %v277
    %2023 = vmatprep.subr.mxu0 0.0
    %2024 = vmatpush1.msra.mxu0 %v276
    %2025 = vmatprep.subr.mxu0 0.0
    %2026 = vmatpush2.msra.mxu0 0.0
    %2027 = vmatprep.subr.mxu0 0.0
    %2028 = vmatpush2.msra.mxu0 0.0
    %2029 = vmatprep.subr.mxu0 0.0
    %2030 = vmatpush2.msra.mxu0 0.0
    %2031 = vmatprep.subr.mxu0 0.0
    %2032 = vmatpush2.msra.mxu0 0.0
    %2033 = vmatprep.subr.mxu0 0.0
    %2034 = vmatpush2.msra.mxu0 0.0
    %2035 = vmatprep.subr.mxu0 0.0
    %2036 = vmatpush2.msra.mxu0 0.0
    %2037 = vmatprep.subr.mxu0 0.0
    %2038 = vmatpush2.msra.mxu0 0.0
    %2039 = vmatprep.subr.mxu0 0.0
    %2040 = vmatpush2.msra.mxu0 0.0
    %2041 = vmatprep.subr.mxu0 0.0
    %2042 = vmatpush2.msra.mxu0 0.0
    %2043 = vmatprep.subr.mxu0 0.0
    %2044 = vmatpush2.msra.mxu0 0.0
    %2045 = vmatprep.subr.mxu0 0.0
    %2046 = vmatpush2.msra.mxu0 0.0
    %2047 = vmatprep.subr.mxu0 0.0
    %2048 = vmatpush2.msra.mxu0 0.0
    %2049 = vmatprep.subr.mxu0 0.0
    %2050 = vmatpush2.msra.mxu0 0.0
    %2051 = vmatprep.subr.mxu0 0.0
    %2052 = vmatpush2.msra.mxu0 0.0
    %2053 = vmatprep.subr.mxu0 0.0
    %2054 = vmatpush2.msra.mxu0 0.0
    %2055 = vmatprep.subr.mxu0 0.0
    %2056 = vmatpush2.msra.mxu0 0.0
    %2057 = vmatprep.mubr.f32.mxu0 0.0
    %2058 = vmatmul.mubr.f32.gmra.mxu0 %v1991
    %v2059 = vpop.f32.mrf.mxu0
    %v2060 = vadd.f32 0.0, %v2059
    %v2061 = vpop.f32.mrf.mxu0
    %2062 = vdwg.mxu0
    %v2064 = vrot.slane %v1985, 4
    %v2066 = vadd.f32 %v175, %v2064
    %v2067 = vxor.u32 %v2066, 2147483648
    %v2068 = vmul.f32 %v2067, 1.442695
    %v2069 = vpow.pop %v2068
    %v2070 = vadd.f32 %v2069, 1.0
    %v2071 = vrcp.pop %v2070
    %v2072 = vmul.f32 1.0, %v2071
    %v2073 = vadd.f32 %v1985, %v450
    %v2075 = vrot.slane %v2073, 4
    %2076 = vrot.lane.b32.xlu0 %v2075, 64
    %v2077 = vpop.permute.xlu0 %2076
    %v2079 = vmul.f32 %v2072, %v2077
    %2081 = vrot.lane.b32.xlu0 %v2079, 64
    %v2082 = vpop.permute.xlu0 %2081
    %v2084 = vadd.f32 %v175, %v2082
    %v2085 = vtanh.pop %v2084
    %v2087 = vrot.slane %v2085, 4
    %v2089 = vsub.f32 %v1867, %v2087
    %v2091 = vrot.slane %v2089, 4
    %2092 = vrot.lane.b32.xlu0 %v2091, 96
    %v2093 = vpop.permute.xlu0 %2092
    %v2095 = vmul.f32 %v2072, %v2093
    %2097 = vrot.lane.b32.xlu0 %v2095, 32
    %v2098 = vpop.permute.xlu0 %2097
    %v2100 = vadd.f32 %v2085, %v2098
    %v2101 = vadd.f32 %v254, %v2060
    %v2102 = vxor.u32 %v2101, 2147483648
    %v2103 = vmul.f32 %v2102, 1.442695
    %v2104 = vpow.pop %v2103
    %v2105 = vadd.f32 %v2104, 1.0
    %v2106 = vrcp.pop %v2105
    %v2107 = vmul.f32 1.0, %v2106
    %v2108 = vadd.f32 %v2060, %v490
    %2110 = vrot.lane.b32.xlu0 %v2108, 64
    %v2111 = vpop.permute.xlu0 %2110
    %v2113 = vmul.f32 %v2107, %v2111
    %2115 = vrot.lane.b32.xlu0 %v2113, 64
    %v2116 = vpop.permute.xlu0 %2115
    %v2118 = vadd.f32 %v254, %v2116
    %v2119 = vtanh.pop %v2118
    %v2121 = vrot.slane %v2119, 4
    %v2123 = vsub.f32 %v1905, %v2121
    %v2125 = vrot.slane %v2123, 4
    %2126 = vrot.lane.b32.xlu0 %v2125, 96
    %v2127 = vpop.permute.xlu0 %2126
    %v2129 = vmul.f32 %v2107, %v2127
    %2131 = vrot.lane.b32.xlu0 %v2129, 32
    %v2132 = vpop.permute.xlu0 %2131
    %v2134 = vadd.f32 %v2119, %v2132
    %2136 = vrot.lane.b32.xlu0 %v2100, 64
    %v2137 = vpop.permute.xlu0 %2136
    %2139 = vst.msk [vmem:[#allocation7 + $0x18] sm:$0xf0] %vm757, %v2137
    %2141 = vrot.lane.b32.xlu0 %v2134, 96
    %v2142 = vpop.permute.xlu0 %2141
    %2144 = vst.msk [vmem:[#allocation7] sm:$0xf] %vm763, %v2142
    %2145 = vst.msk [vmem:[#allocation8 - $0x4] sm:$0xf0] %vm757, %v2137
    %2146 = vrot.lane.b32.xlu0 %v2134, 64
    %v2147 = vpop.permute.xlu0 %2146
    %s2149 = scalar_lea.vmem [#allocation8], 4
    %2150 = vst.msk [vmem:[%s2149] sm:$0xf] %vm526, %v2147
    // Predicated region
    $region50: #{tpu_custom_call.1} parent=1 // pred_check
      _
    $region51: #{tpu_custom_call.1} parent=1 // pred_check_branch
      %2152 = sbr.rel (0) target = $region53
    $region52: #{tpu_custom_call.1} parent=1 // pred_region
      %s2154 = ssub.s32 512, 512
      %2155 = vsyncadd [#allocation4], %s2154
      %s2156 = sshll.u32 [#allocation7], 4
      %s2157 = int_to_ptr.vmem [resolvable:$true] %s2156
      %2162 = dma.vmem_to_hbm [thread:$0]  %s2157, 512, %s10, [#allocation4], 128, 128, 8
    $region53: #{tpu_custom_call.1} parent=1 // pred_fallthru
      _
    // Predicated region
    $region54: #{tpu_custom_call.1} parent=1 // pred_check
      _
    $region55: #{tpu_custom_call.1} parent=1 // pred_check_branch
      %2164 = sbr.rel (0) target = $region57
    $region56: #{tpu_custom_call.1} parent=1 // pred_region
      %s2166 = ssub.s32 128, 128
      %2167 = vsyncadd [#allocation9], %s2166
      %s2168 = sshll.u32 [#allocation8], 4
      %s2169 = int_to_ptr.vmem [resolvable:$true] %s2168
      %2174 = dma.vmem_to_hbm [thread:$0]  %s2169, 128, %s11, [#allocation9], 64, 64, 4
    $region57: #{tpu_custom_call.1} parent=1 // pred_fallthru
      _
    // Predicated region
    $region58: #{tpu_custom_call.1} parent=1 // pred_check
      _
    $region59: #{tpu_custom_call.1} parent=1 // pred_check_branch
      %2176 = sbr.rel (0) target = $region61
    $region60: #{tpu_custom_call.1} parent=1 // pred_region
      %2177 = dma.done [#allocation4], 512
    $region61: #{tpu_custom_call.1} parent=1 // pred_fallthru
      _
    // Predicated region
    $region62: #{tpu_custom_call.1} parent=1 // pred_check
      _
    $region63: #{tpu_custom_call.1} parent=1 // pred_check_branch
      %2179 = sbr.rel (0) target = $region65
    $region64: #{tpu_custom_call.1} parent=1 // pred_region
      %2180 = dma.done [#allocation9], 128
    $region65: #{tpu_custom_call.1} parent=1 // pred_fallthru
      _
    %2181 = vsyncpa [#allocation3], 1
    %2182 = vsyncpa [#allocation6], 1
    %2183 = vsyncpa [#allocation4], 1
    %2184 = vsyncpa [#allocation9], 1

</llo_original>
